<compile_context>
chip_gen: v7x
topology: tpu7x:2x2x1
jax: 0.10.0
libtpu: 0.0.40
codegen_flags: <defaults>
</compile_context>

<pallas_src>
import functools

import jax
import jax.numpy as jnp
from jax.experimental import pallas as pl
from jax.experimental.pallas import tpu as pltpu


def _round_up(n, m):
    return ((n + m - 1) // m) * m


def _cdiv(a, b):
    return (a + b - 1) // b


def _num_tensorcores():
    """Best-effort TensorCores per chip: v7x has 2, v5e/v6e have 1."""
    try:
        kind = jax.devices()[0].device_kind.lower()
    except Exception:
        return 1
    return 2 if "v7" in kind else 1


def cvae_kernel(input_dim, latent_dim,
                xy_ref, eps_ref,
                w1_ref, b1_ref,
                wmulv_ref, bmulv_ref,
                wdz_ref, wdy_ref, bd_ref,
                wout_ref, bout_ref,
                recon_ref, mu_ref, lv_ref):
    f32 = jnp.float32
    bf16 = jnp.bfloat16

    xy = xy_ref[...]                       # (tb, input+cond)  bf16 (cast in wrapper)
    y = xy[:, input_dim:]                  # (tb, cond)        bf16

    # Decoder y-path first: independent of the encoder chain, so its MXU push
    # overlaps the serial encoder -> reparameterize -> decoder dependency.
    ydy = (jnp.dot(y, wdy_ref[...], preferred_element_type=f32) + bd_ref[...])

    # --- Encoder: hidden = tanh([x|y] @ W1 + b1)  (one fused bf16 MXU dot) ---
    h = jnp.tanh(
        jnp.dot(xy, w1_ref[...], preferred_element_type=f32) + b1_ref[...])

    # --- Fused mu | log_var head: one dot, slice after ------------------------
    # Note: bf16 head passes the tolerances below; keep it f32 if tighter
    # torch parity of exp(0.5*log_var) is ever required (it is not the bottleneck).
    mulv = (jnp.dot(h.astype(bf16), wmulv_ref[...],
                    preferred_element_type=f32) + bmulv_ref[...])
    mu = mulv[:, :latent_dim]
    log_var = mulv[:, latent_dim:]

    # --- Reparameterize: z = mu + eps * exp(0.5 * log_var)  (f32, EUP exp) ----
    z = mu + eps_ref[...] * jnp.exp(0.5 * log_var)

    # --- Decoder: hidden = tanh(z @ Wdz + ydy); recon = hidden @ Wout + bout --
    hd = jnp.tanh(
        jnp.dot(z.astype(bf16), wdz_ref[...], preferred_element_type=f32) + ydy)
    recon = (jnp.dot(hd.astype(bf16), wout_ref[...],
                     preferred_element_type=f32) + bout_ref[...])

    # --- Narrow, separate outputs (no padded slab, no wrapper re-slicing) -----
    recon_ref[...] = recon
    mu_ref[...] = mu
    lv_ref[...] = log_var


@functools.partial(jax.jit, static_argnames=("tb", "max_tb"))
def cvae_forward(x, y, eps, params, *, tb=None, max_tb=256):
    """Full CVAE forward pass in one Pallas kernel.

    x:   (B, input_dim)      f32
    y:   (B, condition_dim)  f32
    eps: (B, latent_dim)     f32   standard-normal noise (reparameterization)
    params: packed/fused params from pack_params()
    Returns (reconstructed_x, mu, log_var), matching the PyTorch module.
    """
    B, input_dim = x.shape
    _, cond_dim = y.shape
    latent_dim = eps.shape[1]
    output_dim = params["wout"].shape[1]

    # ---- Batch tiling / grid-step selection ---------------------------------
    # Single grid step on 1-TC chips (v5e/v6e) for small batches; an even step
    # count on v7x so ("parallel",) shards across both TensorCores.
    num_cores = _num_tensorcores()
    b_pad8 = _round_up(B, 8)
    if tb is None:
        steps = max(1, _cdiv(b_pad8, max_tb))
        steps = _round_up(steps, num_cores)
        tb_eff = _round_up(_cdiv(b_pad8, steps), 8)
    else:
        tb_eff = min(_round_up(tb, 8), b_pad8)
        steps = _cdiv(b_pad8, tb_eff)
    b_pad = tb_eff * steps

    # Fuse torch.cat((x, y), dim=1) once in the wrapper; cast activations to
    # bf16 here (halves input DMA, removes the per-step in-kernel cast).
    xy = jnp.concatenate([x, y], axis=1).astype(jnp.bfloat16)
    eps = eps.astype(jnp.float32)
    if b_pad != B:
        xy = jnp.pad(xy, ((0, b_pad - B), (0, 0)))
        eps = jnp.pad(eps, ((0, b_pad - B), (0, 0)))

    def batch_spec(feat):
        return pl.BlockSpec((tb_eff, feat), lambda i: (i, 0))

    def const_spec(arr):
        r, c = arr.shape
        return pl.BlockSpec((r, c), lambda i: (0, 0))   # grid-invariant block

    kernel = functools.partial(cvae_kernel, input_dim, latent_dim)

    recon, mu, log_var = pl.pallas_call(
        kernel,
        grid=(steps,),
        in_specs=[
            batch_spec(input_dim + cond_dim),   # xy   bf16
            batch_spec(latent_dim),             # eps  f32
            const_spec(params["w1"]),           # (input+cond, hidden)  bf16
            const_spec(params["b1"]),           # (1, hidden)           f32
            const_spec(params["wmulv"]),        # (hidden, 2*latent)    bf16
            const_spec(params["bmulv"]),        # (1, 2*latent)         f32
            const_spec(params["wdz"]),          # (latent, hidden)      bf16
            const_spec(params["wdy"]),          # (cond, hidden)        bf16
            const_spec(params["bd"]),           # (1, hidden)           f32
            const_spec(params["wout"]),         # (hidden, output)      bf16
            const_spec(params["bout"]),         # (1, output)           f32
        ],
        out_specs=[
            pl.BlockSpec((tb_eff, output_dim), lambda i: (i, 0)),
            pl.BlockSpec((tb_eff, latent_dim), lambda i: (i, 0)),
            pl.BlockSpec((tb_eff, latent_dim), lambda i: (i, 0)),
        ],
        out_shape=(
            jax.ShapeDtypeStruct((b_pad, output_dim), jnp.float32),
            jax.ShapeDtypeStruct((b_pad, latent_dim), jnp.float32),
            jax.ShapeDtypeStruct((b_pad, latent_dim), jnp.float32),
        ),
        compiler_params=pltpu.CompilerParams(
            dimension_semantics=("parallel",),
            vmem_limit_bytes=32 * 1024 * 1024),
    )(xy, eps,
      params["w1"], params["b1"],
      params["wmulv"], params["bmulv"],
      params["wdz"], params["wdy"], params["bd"],
      params["wout"], params["bout"])

    return recon[:B], mu[:B], log_var[:B]


# ----------------------------------------------------------------------------
# Parameter construction (mirrors the PyTorch module's per-layer weights).
# ----------------------------------------------------------------------------
def init_torch_like_params(key, input_dim, condition_dim, hidden_dim,
                           latent_dim, output_dim):
    """Per-layer f32 weights in (in, out) layout (= nn.Linear.weight.T)."""
    keys = jax.random.split(key, 12)
    s = 0.1

    def w(k, shape):
        return (s * jax.random.normal(k, shape)).astype(jnp.float32)

    return {
        # Encoder fc1: Linear(input_dim + condition_dim, hidden_dim), split.
        "w1x": w(keys[0], (input_dim, hidden_dim)),
        "w1y": w(keys[1], (condition_dim, hidden_dim)),
        "b1":  w(keys[2], (1, hidden_dim)),
        # Encoder fc_mu / fc_log_var: Linear(hidden_dim, latent_dim).
        "wmu": w(keys[3], (hidden_dim, latent_dim)),
        "bmu": w(keys[4], (1, latent_dim)),
        "wlv": w(keys[5], (hidden_dim, latent_dim)),
        "blv": w(keys[6], (1, latent_dim)),
        # Decoder fc1: Linear(latent_dim + condition_dim, hidden_dim), split.
        "wdz": w(keys[7], (latent_dim, hidden_dim)),
        "wdy": w(keys[8], (condition_dim, hidden_dim)),
        "bd":  w(keys[9], (1, hidden_dim)),
        # Decoder fc_out: Linear(hidden_dim, output_dim).
        "wout": w(keys[10], (hidden_dim, output_dim)),
        "bout": w(keys[11], (1, output_dim)),
    }


def pack_params(p):
    """Fuse/stack torch-style weights for the kernel; weights in bf16.

    Encoder fc1 and fc_mu/fc_log_var are fused; decoder fc1 keeps Wdz / Wdy
    separate so the kernel needs no in-kernel [z|y] lane concat.
    """
    bf16 = jnp.bfloat16
    return {
        "w1":    jnp.concatenate([p["w1x"], p["w1y"]], axis=0).astype(bf16),
        "b1":    p["b1"],
        "wmulv": jnp.concatenate([p["wmu"], p["wlv"]], axis=1).astype(bf16),
        "bmulv": jnp.concatenate([p["bmu"], p["blv"]], axis=1),
        "wdz":   p["wdz"].astype(bf16),
        "wdy":   p["wdy"].astype(bf16),
        "bd":    p["bd"],
        "wout":  p["wout"].astype(bf16),
        "bout":  p["bout"],
    }


# ----------------------------------------------------------------------------
# References.
# ----------------------------------------------------------------------------
def cvae_reference_f32(x, y, eps, p):
    """Pure-JAX f32 reference mirroring the PyTorch forward exactly."""
    h = jnp.tanh(x @ p["w1x"] + y @ p["w1y"] + p["b1"])
    mu = h @ p["wmu"] + p["bmu"]
    lv = h @ p["wlv"] + p["blv"]
    z = mu + eps * jnp.exp(0.5 * lv)
    hd = jnp.tanh(z @ p["wdz"] + y @ p["wdy"] + p["bd"])
    recon = hd @ p["wout"] + p["bout"]
    return recon, mu, lv


def cvae_reference_bf16(x, y, eps, pp, latent_dim):
    """Pure-JAX reference mirroring the kernel's fused bf16 math & structure."""
    bf16 = jnp.bfloat16

    def bdot(a, w):
        return jnp.dot(a, w, preferred_element_type=jnp.float32)

    xy = jnp.concatenate([x, y], axis=1).astype(bf16)
    yb = xy[:, x.shape[1]:]
    ydy = bdot(yb, pp["wdy"]) + pp["bd"]
    h = jnp.tanh(bdot(xy, pp["w1"]) + pp["b1"])
    mulv = bdot(h.astype(bf16), pp["wmulv"]) + pp["bmulv"]
    mu = mulv[:, :latent_dim]
    lv = mulv[:, latent_dim:]
    z = mu + eps * jnp.exp(0.5 * lv)
    hd = jnp.tanh(bdot(z.astype(bf16), pp["wdz"]) + ydy)
    recon = bdot(hd.astype(bf16), pp["wout"]) + pp["bout"]
    return recon, mu, lv


if __name__ == "__main__":
    # Small model dims. B=256 -> one grid step on v5e/v6e (1 TC), two 128-row
    # steps on v7x (2 TCs), chosen automatically in cvae_forward.
    B = 256
    input_dim = 16
    condition_dim = 8
    hidden_dim = 32
    latent_dim = 8
    output_dim = 16

    key = jax.random.PRNGKey(0)
    kx, ky, keps, kp = jax.random.split(key, 4)

    x = jax.random.normal(kx, (B, input_dim), dtype=jnp.float32)
    y = jax.random.normal(ky, (B, condition_dim), dtype=jnp.float32)
    # eps plays the role of torch.randn_like(std) in reparameterize().
    eps = jax.random.normal(keps, (B, latent_dim), dtype=jnp.float32)

    torch_params = init_torch_like_params(
        kp, input_dim, condition_dim, hidden_dim, latent_dim, output_dim)
    params = pack_params(torch_params)

    recon, mu, log_var = cvae_forward(x, y, eps, params)
    jax.block_until_ready((recon, mu, log_var))

    assert recon.shape == (B, output_dim)
    assert mu.shape == (B, latent_dim) and log_var.shape == (B, latent_dim)

    # Tight check vs. a reference mirroring the kernel's fused bf16 math.
    rb, mb, lb = cvae_reference_bf16(x, y, eps, params, latent_dim)
    assert jnp.allclose(recon, rb, atol=5e-3), "recon mismatch (bf16 ref)"
    assert jnp.allclose(mu, mb, atol=5e-3), "mu mismatch (bf16 ref)"
    assert jnp.allclose(log_var, lb, atol=5e-3), "log_var mismatch (bf16 ref)"

    # Loose check vs. the exact f32 torch-semantics reference (bf16 rounding).
    r32, m32, l32 = cvae_reference_f32(x, y, eps, torch_params)
    assert jnp.allclose(recon, r32, atol=5e-2), "recon mismatch (f32 ref)"
    assert jnp.allclose(mu, m32, atol=5e-2), "mu mismatch (f32 ref)"
    assert jnp.allclose(log_var, l32, atol=5e-2), "log_var mismatch (f32 ref)"

    print("KERNEL_OK")
</pallas_src>

<mosaic_0001>
module attributes {stable_mosaic.version = 11 : i64} {
  func.func @cvae_kernel(%arg0: i32, %arg1: memref<256x24xbf16, #tpu.memory_space<vmem>>, %arg2: memref<256x8xf32, #tpu.memory_space<vmem>>, %arg3: memref<24x32xbf16, #tpu.memory_space<vmem>>, %arg4: memref<1x32xf32, #tpu.memory_space<vmem>>, %arg5: memref<32x16xbf16, #tpu.memory_space<vmem>>, %arg6: memref<1x16xf32, #tpu.memory_space<vmem>>, %arg7: memref<8x32xbf16, #tpu.memory_space<vmem>>, %arg8: memref<8x32xbf16, #tpu.memory_space<vmem>>, %arg9: memref<1x32xf32, #tpu.memory_space<vmem>>, %arg10: memref<32x16xbf16, #tpu.memory_space<vmem>>, %arg11: memref<1x16xf32, #tpu.memory_space<vmem>>, %arg12: memref<256x16xf32, #tpu.memory_space<vmem>>, %arg13: memref<256x8xf32, #tpu.memory_space<vmem>>, %arg14: memref<256x8xf32, #tpu.memory_space<vmem>>) attributes {dimension_semantics = [#tpu.dimension_semantics<parallel>], iteration_bounds = array<i64: 1>, scalar_prefetch = 0 : i64, scratch_operands = 0 : i64, tpu.core_type = #tpu.core_type<tc>, window_params = [{transform_indices = @transform_0, window_bounds = array<i64: 256, 24>}, {transform_indices = @transform_1, window_bounds = array<i64: 256, 8>}, {pipeline_mode = #tpu.pipeline_mode<synchronous>, transform_indices = @transform_2, window_bounds = array<i64: 24, 32>}, {pipeline_mode = #tpu.pipeline_mode<synchronous>, transform_indices = @transform_3, window_bounds = array<i64: 1, 32>}, {pipeline_mode = #tpu.pipeline_mode<synchronous>, transform_indices = @transform_4, window_bounds = array<i64: 32, 16>}, {pipeline_mode = #tpu.pipeline_mode<synchronous>, transform_indices = @transform_5, window_bounds = array<i64: 1, 16>}, {pipeline_mode = #tpu.pipeline_mode<synchronous>, transform_indices = @transform_6, window_bounds = array<i64: 8, 32>}, {pipeline_mode = #tpu.pipeline_mode<synchronous>, transform_indices = @transform_7, window_bounds = array<i64: 8, 32>}, {pipeline_mode = #tpu.pipeline_mode<synchronous>, transform_indices = @transform_8, window_bounds = array<i64: 1, 32>}, {pipeline_mode = #tpu.pipeline_mode<synchronous>, transform_indices = @transform_9, window_bounds = array<i64: 32, 16>}, {pipeline_mode = #tpu.pipeline_mode<synchronous>, transform_indices = @transform_10, window_bounds = array<i64: 1, 16>}, {transform_indices = @transform_11, window_bounds = array<i64: 256, 16>}, {transform_indices = @transform_12, window_bounds = array<i64: 256, 8>}, {transform_indices = @transform_13, window_bounds = array<i64: 256, 8>}]} {
    %c0 = arith.constant 0 : index
    %c0_0 = arith.constant 0 : index
    %0 = vector.load %arg1[%c0, %c0_0] : memref<256x24xbf16, #tpu.memory_space<vmem>>, vector<256x24xbf16>
    %1 = vector.extract_strided_slice %0 {offsets = [0, 16], sizes = [256, 8], strides = [1, 1]} : vector<256x24xbf16> to vector<256x8xbf16>
    %c0_1 = arith.constant 0 : index
    %c0_2 = arith.constant 0 : index
    %2 = vector.load %arg8[%c0_1, %c0_2] : memref<8x32xbf16, #tpu.memory_space<vmem>>, vector<8x32xbf16>
    %cst = arith.constant dense<0.000000e+00> : vector<256x32xf32>
    %3 = tpu.matmul %1, %2, %cst {dimension_numbers = #tpu.dot_dimension_numbers<[1], [0], [0], [1], [0, 0, 1, 1], [], []>} : vector<256x8xbf16>, vector<8x32xbf16>, vector<256x32xf32> -> vector<256x32xf32>
    %c0_3 = arith.constant 0 : index
    %c0_4 = arith.constant 0 : index
    %4 = vector.load %arg9[%c0_3, %c0_4] : memref<1x32xf32, #tpu.memory_space<vmem>>, vector<1x32xf32>
    %5 = vector.broadcast %4 : vector<1x32xf32> to vector<256x32xf32>
    %6 = arith.addf %3, %5 : vector<256x32xf32>
    %c0_5 = arith.constant 0 : index
    %c0_6 = arith.constant 0 : index
    %7 = vector.load %arg3[%c0_5, %c0_6] : memref<24x32xbf16, #tpu.memory_space<vmem>>, vector<24x32xbf16>
    %cst_7 = arith.constant dense<0.000000e+00> : vector<256x32xf32>
    %8 = tpu.matmul %0, %7, %cst_7 {dimension_numbers = #tpu.dot_dimension_numbers<[1], [0], [0], [1], [0, 0, 1, 1], [], []>} : vector<256x24xbf16>, vector<24x32xbf16>, vector<256x32xf32> -> vector<256x32xf32>
    %c0_8 = arith.constant 0 : index
    %c0_9 = arith.constant 0 : index
    %9 = vector.load %arg4[%c0_8, %c0_9] : memref<1x32xf32, #tpu.memory_space<vmem>>, vector<1x32xf32>
    %10 = vector.broadcast %9 : vector<1x32xf32> to vector<256x32xf32>
    %11 = arith.addf %8, %10 : vector<256x32xf32>
    %12 = math.tanh %11 : vector<256x32xf32>
    %13 = arith.truncf %12 : vector<256x32xf32> to vector<256x32xbf16>
    %c0_10 = arith.constant 0 : index
    %c0_11 = arith.constant 0 : index
    %14 = vector.load %arg5[%c0_10, %c0_11] : memref<32x16xbf16, #tpu.memory_space<vmem>>, vector<32x16xbf16>
    %cst_12 = arith.constant dense<0.000000e+00> : vector<256x16xf32>
    %15 = tpu.matmul %13, %14, %cst_12 {dimension_numbers = #tpu.dot_dimension_numbers<[1], [0], [0], [1], [0, 0, 1, 1], [], []>} : vector<256x32xbf16>, vector<32x16xbf16>, vector<256x16xf32> -> vector<256x16xf32>
    %c0_13 = arith.constant 0 : index
    %c0_14 = arith.constant 0 : index
    %16 = vector.load %arg6[%c0_13, %c0_14] : memref<1x16xf32, #tpu.memory_space<vmem>>, vector<1x16xf32>
    %17 = vector.broadcast %16 : vector<1x16xf32> to vector<256x16xf32>
    %18 = arith.addf %15, %17 : vector<256x16xf32>
    %19 = vector.extract_strided_slice %18 {offsets = [0, 0], sizes = [256, 8], strides = [1, 1]} : vector<256x16xf32> to vector<256x8xf32>
    %20 = vector.extract_strided_slice %18 {offsets = [0, 8], sizes = [256, 8], strides = [1, 1]} : vector<256x16xf32> to vector<256x8xf32>
    %c0_15 = arith.constant 0 : index
    %c0_16 = arith.constant 0 : index
    %21 = vector.load %arg2[%c0_15, %c0_16] : memref<256x8xf32, #tpu.memory_space<vmem>>, vector<256x8xf32>
    %cst_17 = arith.constant 5.000000e-01 : f32
    %22 = vector.broadcast %cst_17 : f32 to vector<256x8xf32>
    %23 = arith.mulf %22, %20 : vector<256x8xf32>
    %24 = math.exp %23 : vector<256x8xf32>
    %25 = arith.mulf %21, %24 : vector<256x8xf32>
    %26 = arith.addf %19, %25 : vector<256x8xf32>
    %27 = arith.truncf %26 : vector<256x8xf32> to vector<256x8xbf16>
    %c0_18 = arith.constant 0 : index
    %c0_19 = arith.constant 0 : index
    %28 = vector.load %arg7[%c0_18, %c0_19] : memref<8x32xbf16, #tpu.memory_space<vmem>>, vector<8x32xbf16>
    %cst_20 = arith.constant dense<0.000000e+00> : vector<256x32xf32>
    %29 = tpu.matmul %27, %28, %cst_20 {dimension_numbers = #tpu.dot_dimension_numbers<[1], [0], [0], [1], [0, 0, 1, 1], [], []>} : vector<256x8xbf16>, vector<8x32xbf16>, vector<256x32xf32> -> vector<256x32xf32>
    %30 = arith.addf %29, %6 : vector<256x32xf32>
    %31 = math.tanh %30 : vector<256x32xf32>
    %32 = arith.truncf %31 : vector<256x32xf32> to vector<256x32xbf16>
    %c0_21 = arith.constant 0 : index
    %c0_22 = arith.constant 0 : index
    %33 = vector.load %arg10[%c0_21, %c0_22] : memref<32x16xbf16, #tpu.memory_space<vmem>>, vector<32x16xbf16>
    %cst_23 = arith.constant dense<0.000000e+00> : vector<256x16xf32>
    %34 = tpu.matmul %32, %33, %cst_23 {dimension_numbers = #tpu.dot_dimension_numbers<[1], [0], [0], [1], [0, 0, 1, 1], [], []>} : vector<256x32xbf16>, vector<32x16xbf16>, vector<256x16xf32> -> vector<256x16xf32>
    %c0_24 = arith.constant 0 : index
    %c0_25 = arith.constant 0 : index
    %35 = vector.load %arg11[%c0_24, %c0_25] : memref<1x16xf32, #tpu.memory_space<vmem>>, vector<1x16xf32>
    %36 = vector.broadcast %35 : vector<1x16xf32> to vector<256x16xf32>
    %37 = arith.addf %34, %36 : vector<256x16xf32>
    %c0_26 = arith.constant 0 : index
    %c0_27 = arith.constant 0 : index
    %38 = vector.load %arg12[%c0_26, %c0_27] : memref<256x16xf32, #tpu.memory_space<vmem>>, vector<256x16xf32>
    tpu.vector_store %arg12[%c0_26, %c0_27], %37 {strides = array<i32>} : memref<256x16xf32, #tpu.memory_space<vmem>>, vector<256x16xf32>,
    %c0_28 = arith.constant 0 : index
    %c0_29 = arith.constant 0 : index
    %39 = vector.load %arg13[%c0_28, %c0_29] : memref<256x8xf32, #tpu.memory_space<vmem>>, vector<256x8xf32>
    tpu.vector_store %arg13[%c0_28, %c0_29], %19 {strides = array<i32>} : memref<256x8xf32, #tpu.memory_space<vmem>>, vector<256x8xf32>,
    %c0_30 = arith.constant 0 : index
    %c0_31 = arith.constant 0 : index
    %40 = vector.load %arg14[%c0_30, %c0_31] : memref<256x8xf32, #tpu.memory_space<vmem>>, vector<256x8xf32>
    tpu.vector_store %arg14[%c0_30, %c0_31], %20 {strides = array<i32>} : memref<256x8xf32, #tpu.memory_space<vmem>>, vector<256x8xf32>,
    return
  }
  func.func @transform_0(%arg0: i32) -> (i32, i32) {
    %c0_i32 = arith.constant 0 : i32
    %c0_i32_0 = arith.constant 0 : i32
    return %arg0, %c0_i32 : i32, i32
  }
  func.func @transform_1(%arg0: i32) -> (i32, i32) {
    %c0_i32 = arith.constant 0 : i32
    %c0_i32_0 = arith.constant 0 : i32
    return %arg0, %c0_i32 : i32, i32
  }
  func.func @transform_2(%arg0: i32) -> (i32, i32) {
    %c0_i32 = arith.constant 0 : i32
    %c0_i32_0 = arith.constant 0 : i32
    %c0_i32_1 = arith.constant 0 : i32
    return %c0_i32, %c0_i32_0 : i32, i32
  }
  func.func @transform_3(%arg0: i32) -> (i32, i32) {
    %c0_i32 = arith.constant 0 : i32
    %c0_i32_0 = arith.constant 0 : i32
    %c0_i32_1 = arith.constant 0 : i32
    return %c0_i32, %c0_i32_0 : i32, i32
  }
  func.func @transform_4(%arg0: i32) -> (i32, i32) {
    %c0_i32 = arith.constant 0 : i32
    %c0_i32_0 = arith.constant 0 : i32
    %c0_i32_1 = arith.constant 0 : i32
    return %c0_i32, %c0_i32_0 : i32, i32
  }
  func.func @transform_5(%arg0: i32) -> (i32, i32) {
    %c0_i32 = arith.constant 0 : i32
    %c0_i32_0 = arith.constant 0 : i32
    %c0_i32_1 = arith.constant 0 : i32
    return %c0_i32, %c0_i32_0 : i32, i32
  }
  func.func @transform_6(%arg0: i32) -> (i32, i32) {
    %c0_i32 = arith.constant 0 : i32
    %c0_i32_0 = arith.constant 0 : i32
    %c0_i32_1 = arith.constant 0 : i32
    return %c0_i32, %c0_i32_0 : i32, i32
  }
  func.func @transform_7(%arg0: i32) -> (i32, i32) {
    %c0_i32 = arith.constant 0 : i32
    %c0_i32_0 = arith.constant 0 : i32
    %c0_i32_1 = arith.constant 0 : i32
    return %c0_i32, %c0_i32_0 : i32, i32
  }
  func.func @transform_8(%arg0: i32) -> (i32, i32) {
    %c0_i32 = arith.constant 0 : i32
    %c0_i32_0 = arith.constant 0 : i32
    %c0_i32_1 = arith.constant 0 : i32
    return %c0_i32, %c0_i32_0 : i32, i32
  }
  func.func @transform_9(%arg0: i32) -> (i32, i32) {
    %c0_i32 = arith.constant 0 : i32
    %c0_i32_0 = arith.constant 0 : i32
    %c0_i32_1 = arith.constant 0 : i32
    return %c0_i32, %c0_i32_0 : i32, i32
  }
  func.func @transform_10(%arg0: i32) -> (i32, i32) {
    %c0_i32 = arith.constant 0 : i32
    %c0_i32_0 = arith.constant 0 : i32
    %c0_i32_1 = arith.constant 0 : i32
    return %c0_i32, %c0_i32_0 : i32, i32
  }
  func.func @transform_11(%arg0: i32) -> (i32, i32) {
    %c0_i32 = arith.constant 0 : i32
    %c0_i32_0 = arith.constant 0 : i32
    return %arg0, %c0_i32 : i32, i32
  }
  func.func @transform_12(%arg0: i32) -> (i32, i32) {
    %c0_i32 = arith.constant 0 : i32
    %c0_i32_0 = arith.constant 0 : i32
    return %arg0, %c0_i32 : i32, i32
  }
  func.func @transform_13(%arg0: i32) -> (i32, i32) {
    %c0_i32 = arith.constant 0 : i32
    %c0_i32_0 = arith.constant 0 : i32
    return %arg0, %c0_i32 : i32, i32
  }
}

</mosaic_0001>

<llo_original>
// kernel: cvae_forward.1
$region0: #{cvae_forward.1}
  #allocation0 [shape = 'u32[]', space=smem, size = 0x4, offset = 0x4, fixed_abs, tag = 'smem constant byte address 0x4 - core index']
  #allocation1 [shape = 'u32[144,128]{1,0:T(1,128)}', space=vmem, size = 0x12000, scoped, tag = 'internal scratch']
  %s0 = inlined_call_operand.vmem [shape: bf16[256,24], index: 0, kind: input, shape index: {}]
  %s1 = inlined_call_operand.vmem [shape: f32[256,8], index: 1, kind: input, shape index: {}]
  %s2 = inlined_call_operand.vmem [shape: bf16[24,32], index: 2, kind: input, shape index: {}]
  %s3 = inlined_call_operand.vmem [shape: f32[1,32], index: 3, kind: input, shape index: {}]
  %s4 = inlined_call_operand.vmem [shape: bf16[32,16], index: 4, kind: input, shape index: {}]
  %s5 = inlined_call_operand.vmem [shape: f32[1,16], index: 5, kind: input, shape index: {}]
  %s6 = inlined_call_operand.vmem [shape: bf16[8,32], index: 6, kind: input, shape index: {}]
  %s7 = inlined_call_operand.vmem [shape: bf16[8,32], index: 7, kind: input, shape index: {}]
  %s8 = inlined_call_operand.vmem [shape: f32[1,32], index: 8, kind: input, shape index: {}]
  %s9 = inlined_call_operand.vmem [shape: bf16[32,16], index: 9, kind: input, shape index: {}]
  %s10 = inlined_call_operand.vmem [shape: f32[1,16], index: 10, kind: input, shape index: {}]
  %s11 = inlined_call_operand.vmem [shape: f32[256,16], index: 11, kind: output, shape index: {0}]
  %s12 = inlined_call_operand.vmem [shape: f32[256,8], index: 12, kind: output, shape index: {1}]
  %s13 = inlined_call_operand.vmem [shape: f32[256,8], index: 13, kind: output, shape index: {2}]
  %14 = xla_tuple %s11, %s12, %s13
  %s15 = sld [smem:[#allocation0]]
  $region70: #{cvae_forward.1} parent=0
    _
  %s17 = ssub.s32 1, %s15
  %s18 = scalar_select 0, %s17, %s15
  // Predicated region
  $region2: #{cvae_forward.1} parent=0 // pred_check
    _
  $region3: #{cvae_forward.1} parent=0 // pred_check_branch
    %20 = sbr.rel (0) target = $region5
  $region4: #{cvae_forward.1} parent=0 // pred_region
    _
  $region5: #{cvae_forward.1} parent=0 // pred_fallthru
    _
  // Predicated region
  $region6: #{cvae_forward.1} parent=0 // pred_check
    _
  $region7: #{cvae_forward.1} parent=0 // pred_check_branch
    %22 = sbr.rel (0) target = $region9
  $region8: #{cvae_forward.1} parent=0 // pred_region
    _
  $region9: #{cvae_forward.1} parent=0 // pred_fallthru
    _
  // Predicated region
  $region10: #{cvae_forward.1} parent=0 // pred_check
    _
  $region11: #{cvae_forward.1} parent=0 // pred_check_branch
    %24 = sbr.rel (0) target = $region13
  $region12: #{cvae_forward.1} parent=0 // pred_region
    _
  $region13: #{cvae_forward.1} parent=0 // pred_fallthru
    _
  // Predicated region
  $region14: #{cvae_forward.1} parent=0 // pred_check
    _
  $region15: #{cvae_forward.1} parent=0 // pred_check_branch
    %26 = sbr.rel (0) target = $region17
  $region16: #{cvae_forward.1} parent=0 // pred_region
    _
  $region17: #{cvae_forward.1} parent=0 // pred_fallthru
    _
  // Predicated region
  $region18: #{cvae_forward.1} parent=0 // pred_check
    _
  $region19: #{cvae_forward.1} parent=0 // pred_check_branch
    %28 = sbr.rel (0) target = $region21
  $region20: #{cvae_forward.1} parent=0 // pred_region
    _
  $region21: #{cvae_forward.1} parent=0 // pred_fallthru
    _
  // Predicated region
  $region22: #{cvae_forward.1} parent=0 // pred_check
    _
  $region23: #{cvae_forward.1} parent=0 // pred_check_branch
    %30 = sbr.rel (0) target = $region25
  $region24: #{cvae_forward.1} parent=0 // pred_region
    _
  $region25: #{cvae_forward.1} parent=0 // pred_fallthru
    _
  // Predicated region
  $region26: #{cvae_forward.1} parent=0 // pred_check
    _
  $region27: #{cvae_forward.1} parent=0 // pred_check_branch
    %32 = sbr.rel (0) target = $region29
  $region28: #{cvae_forward.1} parent=0 // pred_region
    _
  $region29: #{cvae_forward.1} parent=0 // pred_fallthru
    _
  // Predicated region
  $region30: #{cvae_forward.1} parent=0 // pred_check
    _
  $region31: #{cvae_forward.1} parent=0 // pred_check_branch
    %34 = sbr.rel (0) target = $region33
  $region32: #{cvae_forward.1} parent=0 // pred_region
    _
  $region33: #{cvae_forward.1} parent=0 // pred_fallthru
    _
  // Predicated region
  $region34: #{cvae_forward.1} parent=0 // pred_check
    _
  $region35: #{cvae_forward.1} parent=0 // pred_check_branch
    %36 = sbr.rel (0) target = $region37
  $region36: #{cvae_forward.1} parent=0 // pred_region
    _
  $region37: #{cvae_forward.1} parent=0 // pred_fallthru
    _
  // Predicated region
  $region38: #{cvae_forward.1} parent=0 // pred_check
    _
  $region39: #{cvae_forward.1} parent=0 // pred_check_branch
    %38 = sbr.rel (0) target = $region41
  $region40: #{cvae_forward.1} parent=0 // pred_region
    _
  $region41: #{cvae_forward.1} parent=0 // pred_fallthru
    _
  // Predicated region
  $region42: #{cvae_forward.1} parent=0 // pred_check
    _
  $region43: #{cvae_forward.1} parent=0 // pred_check_branch
    %40 = sbr.rel (0) target = $region45
  $region44: #{cvae_forward.1} parent=0 // pred_region
    _
  $region45: #{cvae_forward.1} parent=0 // pred_fallthru
    _
  %v42 = vld [vmem:[%s0] sm:$0xf]
  %v43 = vld [vmem:[%s0 + $0x4] sm:$0xf]
  %v44 = vld [vmem:[%s0 + $0x8] sm:$0xf]
  %v45 = vld [vmem:[%s0 + $0xc] sm:$0xf]
  %v46 = vld [vmem:[%s0 + $0x10] sm:$0xf]
  %v47 = vld [vmem:[%s0 + $0x14] sm:$0xf]
  %v48 = vld [vmem:[%s0 + $0x18] sm:$0xf]
  %v49 = vld [vmem:[%s0 + $0x1c] sm:$0xf]
  %v50 = vld [vmem:[%s0 + $0x20] sm:$0xf]
  %v51 = vld [vmem:[%s0 + $0x24] sm:$0xf]
  %v52 = vld [vmem:[%s0 + $0x28] sm:$0xf]
  %v53 = vld [vmem:[%s0 + $0x2c] sm:$0xf]
  %v54 = vld [vmem:[%s0 + $0x30] sm:$0xf]
  %v55 = vld [vmem:[%s0 + $0x34] sm:$0xf]
  %v56 = vld [vmem:[%s0 + $0x38] sm:$0xf]
  %v57 = vld [vmem:[%s0 + $0x3c] sm:$0xf]
  %v58 = vld [vmem:[%s0 + $0x40] sm:$0xf]
  %v59 = vld [vmem:[%s0 + $0x44] sm:$0xf]
  %v60 = vld [vmem:[%s0 + $0x48] sm:$0xf]
  %v61 = vld [vmem:[%s0 + $0x4c] sm:$0xf]
  %v62 = vld [vmem:[%s0 + $0x50] sm:$0xf]
  %v63 = vld [vmem:[%s0 + $0x54] sm:$0xf]
  %v64 = vld [vmem:[%s0 + $0x58] sm:$0xf]
  %v65 = vld [vmem:[%s0 + $0x5c] sm:$0xf]
  %v66 = vld [vmem:[%s0 + $0x60] sm:$0xf]
  %v67 = vld [vmem:[%s0 + $0x64] sm:$0xf]
  %v68 = vld [vmem:[%s0 + $0x68] sm:$0xf]
  %v69 = vld [vmem:[%s0 + $0x6c] sm:$0xf]
  %v70 = vld [vmem:[%s0 + $0x70] sm:$0xf]
  %v71 = vld [vmem:[%s0 + $0x74] sm:$0xf]
  %v72 = vld [vmem:[%s0 + $0x78] sm:$0xf]
  %v73 = vld [vmem:[%s0 + $0x7c] sm:$0xf]
  %v74 = vld [vmem:[%s7] sm:$0xf]
  %v75 = vld [vmem:[%s8] sm:$0x1]
  %v77 = vlaneseq
  %v78 = vshrl.u32 %v77, 7
  %v79 = vsub.s32 0, %v78
  %v80 = vrot.slane %v75, %v79
  %v114 = vunpack.c.l.b16 %v42
  %v115 = vunpack.c.l.b16 %v43
  %v116 = vunpack.c.l.b16 %v44
  %v117 = vunpack.c.l.b16 %v45
  %v118 = vunpack.c.l.b16 %v46
  %v119 = vunpack.c.l.b16 %v47
  %v120 = vunpack.c.l.b16 %v48
  %v121 = vunpack.c.l.b16 %v49
  %v122 = vunpack.c.l.b16 %v50
  %v123 = vunpack.c.l.b16 %v51
  %v124 = vunpack.c.l.b16 %v52
  %v125 = vunpack.c.l.b16 %v53
  %v126 = vunpack.c.l.b16 %v54
  %v127 = vunpack.c.l.b16 %v55
  %v128 = vunpack.c.l.b16 %v56
  %v129 = vunpack.c.l.b16 %v57
  %v130 = vunpack.c.l.b16 %v58
  %v131 = vunpack.c.l.b16 %v59
  %v132 = vunpack.c.l.b16 %v60
  %v133 = vunpack.c.l.b16 %v61
  %v134 = vunpack.c.l.b16 %v62
  %v135 = vunpack.c.l.b16 %v63
  %v136 = vunpack.c.l.b16 %v64
  %v137 = vunpack.c.l.b16 %v65
  %v138 = vunpack.c.l.b16 %v66
  %v139 = vunpack.c.l.b16 %v67
  %v140 = vunpack.c.l.b16 %v68
  %v141 = vunpack.c.l.b16 %v69
  %v142 = vunpack.c.l.b16 %v70
  %v143 = vunpack.c.l.b16 %v71
  %v144 = vunpack.c.l.b16 %v72
  %v145 = vunpack.c.l.b16 %v73
  %v146 = vpack.c.b16 %v115, %v114
  %v147 = vpack.c.b16 %v117, %v116
  %v148 = vpack.c.b16 %v119, %v118
  %v149 = vpack.c.b16 %v121, %v120
  %v150 = vpack.c.b16 %v123, %v122
  %v151 = vpack.c.b16 %v125, %v124
  %v152 = vpack.c.b16 %v127, %v126
  %v153 = vpack.c.b16 %v129, %v128
  %v154 = vpack.c.b16 %v131, %v130
  %v155 = vpack.c.b16 %v133, %v132
  %v156 = vpack.c.b16 %v135, %v134
  %v157 = vpack.c.b16 %v137, %v136
  %v158 = vpack.c.b16 %v139, %v138
  %v159 = vpack.c.b16 %v141, %v140
  %v160 = vpack.c.b16 %v143, %v142
  %v161 = vpack.c.b16 %v145, %v144
  %162 = vrot.lane.b32.xlu0 %v146, 112
  %v163 = vpop.permute.xlu0 %162
  %164 = vrot.lane.b32.xlu0 %v147, 112
  %v165 = vpop.permute.xlu0 %164
  %166 = vrot.lane.b32.xlu0 %v148, 112
  %v167 = vpop.permute.xlu0 %166
  %168 = vrot.lane.b32.xlu0 %v149, 112
  %v169 = vpop.permute.xlu0 %168
  %170 = vrot.lane.b32.xlu0 %v150, 112
  %v171 = vpop.permute.xlu0 %170
  %172 = vrot.lane.b32.xlu0 %v151, 112
  %v173 = vpop.permute.xlu0 %172
  %174 = vrot.lane.b32.xlu0 %v152, 112
  %v175 = vpop.permute.xlu0 %174
  %176 = vrot.lane.b32.xlu0 %v153, 112
  %v177 = vpop.permute.xlu0 %176
  %178 = vrot.lane.b32.xlu0 %v154, 112
  %v179 = vpop.permute.xlu0 %178
  %180 = vrot.lane.b32.xlu0 %v155, 112
  %v181 = vpop.permute.xlu0 %180
  %182 = vrot.lane.b32.xlu0 %v156, 112
  %v183 = vpop.permute.xlu0 %182
  %184 = vrot.lane.b32.xlu0 %v157, 112
  %v185 = vpop.permute.xlu0 %184
  %186 = vrot.lane.b32.xlu0 %v158, 112
  %v187 = vpop.permute.xlu0 %186
  %188 = vrot.lane.b32.xlu0 %v159, 112
  %v189 = vpop.permute.xlu0 %188
  %190 = vrot.lane.b32.xlu0 %v160, 112
  %v191 = vpop.permute.xlu0 %190
  %192 = vrot.lane.b32.xlu0 %v161, 112
  %v193 = vpop.permute.xlu0 %192
  %vm194 = vcmask 64512
  %v196 = vsel %vm194, %v163, 0
  %v199 = vsel %vm194, %v165, 0
  %v202 = vsel %vm194, %v167, 0
  %v205 = vsel %vm194, %v169, 0
  %v208 = vsel %vm194, %v171, 0
  %v211 = vsel %vm194, %v173, 0
  %v214 = vsel %vm194, %v175, 0
  %v217 = vsel %vm194, %v177, 0
  %v220 = vsel %vm194, %v179, 0
  %v223 = vsel %vm194, %v181, 0
  %v226 = vsel %vm194, %v183, 0
  %v229 = vsel %vm194, %v185, 0
  %v232 = vsel %vm194, %v187, 0
  %v235 = vsel %vm194, %v189, 0
  %v238 = vsel %vm194, %v191, 0
  %v241 = vsel %vm194, %v193, 0
  %vm243 = vcmask 1043456
  %v245 = vsel %vm243, %v74, 0
  %247 = vmatprep.subr.bf16.mxu0 0
  %248 = vmatpush1.bf16.msra.mxu0 %v245
  %249 = vmatprep.subr.bf16.mxu0 0
  %250 = vmatpush1.bf16.msra.mxu0 0
  %251 = vmatprep.subr.bf16.mxu0 0
  %252 = vmatpush1.bf16.msra.mxu0 0
  %253 = vmatprep.subr.bf16.mxu0 0
  %254 = vmatpush1.bf16.msra.mxu0 0
  %255 = vmatprep.subr.bf16.mxu0 0
  %256 = vmatpush1.bf16.msra.mxu0 0
  %257 = vmatprep.subr.bf16.mxu0 0
  %258 = vmatpush1.bf16.msra.mxu0 0
  %259 = vmatprep.subr.bf16.mxu0 0
  %260 = vmatpush1.bf16.msra.mxu0 0
  %261 = vmatprep.subr.bf16.mxu0 0
  %262 = vmatpush1.bf16.msra.mxu0 0
  %263 = vmatprep.subr.bf16.mxu0 0
  %264 = vmatpush1.bf16.msra.mxu0 0
  %265 = vmatprep.subr.bf16.mxu0 0
  %266 = vmatpush1.bf16.msra.mxu0 0
  %267 = vmatprep.subr.bf16.mxu0 0
  %268 = vmatpush1.bf16.msra.mxu0 0
  %269 = vmatprep.subr.bf16.mxu0 0
  %270 = vmatpush1.bf16.msra.mxu0 0
  %271 = vmatprep.subr.bf16.mxu0 0
  %272 = vmatpush1.bf16.msra.mxu0 0
  %273 = vmatprep.subr.bf16.mxu0 0
  %274 = vmatpush1.bf16.msra.mxu0 0
  %275 = vmatprep.subr.bf16.mxu0 0
  %276 = vmatpush1.bf16.msra.mxu0 0
  %277 = vmatprep.subr.bf16.mxu0 0
  %278 = vmatpush1.bf16.msra.mxu0 0
  %279 = vmatprep.mubr.bf16.mxu0 0
  %280 = vmatmul.mubr.bf16.gmra.mrb[0].mxu0 %v196
  %v281 = vpop.f32.mrb[0].mxu0
  %v282 = vadd.f32 %v80, %v281
  %v283 = vpop.f32.mrb[0].mxu0
  %v284 = vpop.f32.mrb[0].mxu0
  %v285 = vadd.f32 %v80, %v284
  %v286 = vpop.f32.mrb[0].mxu0
  %287 = vmatprep.mubr.bf16.mxu0 0
  %288 = vmatmul.mubr.bf16.gmra.mrb[0].mxu0 %v199
  %v289 = vpop.f32.mrb[0].mxu0
  %v290 = vadd.f32 %v80, %v289
  %v291 = vpop.f32.mrb[0].mxu0
  %v292 = vpop.f32.mrb[0].mxu0
  %v293 = vadd.f32 %v80, %v292
  %v294 = vpop.f32.mrb[0].mxu0
  %295 = vmatprep.mubr.bf16.mxu0 0
  %296 = vmatmul.mubr.bf16.gmra.mrb[0].mxu0 %v202
  %v297 = vpop.f32.mrb[0].mxu0
  %v298 = vadd.f32 %v80, %v297
  %v299 = vpop.f32.mrb[0].mxu0
  %v300 = vpop.f32.mrb[0].mxu0
  %v301 = vadd.f32 %v80, %v300
  %v302 = vpop.f32.mrb[0].mxu0
  %303 = vmatprep.mubr.bf16.mxu0 0
  %304 = vmatmul.mubr.bf16.gmra.mrb[0].mxu0 %v205
  %v305 = vpop.f32.mrb[0].mxu0
  %v306 = vadd.f32 %v80, %v305
  %v307 = vpop.f32.mrb[0].mxu0
  %v308 = vpop.f32.mrb[0].mxu0
  %v309 = vadd.f32 %v80, %v308
  %v310 = vpop.f32.mrb[0].mxu0
  %311 = vmatprep.mubr.bf16.mxu0 0
  %312 = vmatmul.mubr.bf16.gmra.mrb[0].mxu0 %v208
  %v313 = vpop.f32.mrb[0].mxu0
  %v314 = vadd.f32 %v80, %v313
  %v315 = vpop.f32.mrb[0].mxu0
  %v316 = vpop.f32.mrb[0].mxu0
  %v317 = vadd.f32 %v80, %v316
  %v318 = vpop.f32.mrb[0].mxu0
  %319 = vmatprep.mubr.bf16.mxu0 0
  %320 = vmatmul.mubr.bf16.gmra.mrb[0].mxu0 %v211
  %v321 = vpop.f32.mrb[0].mxu0
  %v322 = vadd.f32 %v80, %v321
  %v323 = vpop.f32.mrb[0].mxu0
  %v324 = vpop.f32.mrb[0].mxu0
  %v325 = vadd.f32 %v80, %v324
  %v326 = vpop.f32.mrb[0].mxu0
  %327 = vmatprep.mubr.bf16.mxu0 0
  %328 = vmatmul.mubr.bf16.gmra.mrb[0].mxu0 %v214
  %v329 = vpop.f32.mrb[0].mxu0
  %v330 = vadd.f32 %v80, %v329
  %v331 = vpop.f32.mrb[0].mxu0
  %v332 = vpop.f32.mrb[0].mxu0
  %v333 = vadd.f32 %v80, %v332
  %v334 = vpop.f32.mrb[0].mxu0
  %335 = vmatprep.mubr.bf16.mxu0 0
  %336 = vmatmul.mubr.bf16.gmra.mrb[0].mxu0 %v217
  %v337 = vpop.f32.mrb[0].mxu0
  %v338 = vadd.f32 %v80, %v337
  %v339 = vpop.f32.mrb[0].mxu0
  %v340 = vpop.f32.mrb[0].mxu0
  %v341 = vadd.f32 %v80, %v340
  %v342 = vpop.f32.mrb[0].mxu0
  %343 = vmatprep.mubr.bf16.mxu0 0
  %344 = vmatmul.mubr.bf16.gmra.mrb[0].mxu0 %v220
  %v345 = vpop.f32.mrb[0].mxu0
  %v346 = vadd.f32 %v80, %v345
  %v347 = vpop.f32.mrb[0].mxu0
  %v348 = vpop.f32.mrb[0].mxu0
  %v349 = vadd.f32 %v80, %v348
  %v350 = vpop.f32.mrb[0].mxu0
  %351 = vmatprep.mubr.bf16.mxu0 0
  %352 = vmatmul.mubr.bf16.gmra.mrb[0].mxu0 %v223
  %v353 = vpop.f32.mrb[0].mxu0
  %v354 = vadd.f32 %v80, %v353
  %v355 = vpop.f32.mrb[0].mxu0
  %v356 = vpop.f32.mrb[0].mxu0
  %v357 = vadd.f32 %v80, %v356
  %v358 = vpop.f32.mrb[0].mxu0
  %359 = vmatprep.mubr.bf16.mxu0 0
  %360 = vmatmul.mubr.bf16.gmra.mrb[0].mxu0 %v226
  %v361 = vpop.f32.mrb[0].mxu0
  %v362 = vadd.f32 %v80, %v361
  %v363 = vpop.f32.mrb[0].mxu0
  %v364 = vpop.f32.mrb[0].mxu0
  %v365 = vadd.f32 %v80, %v364
  %v366 = vpop.f32.mrb[0].mxu0
  %367 = vmatprep.mubr.bf16.mxu0 0
  %368 = vmatmul.mubr.bf16.gmra.mrb[0].mxu0 %v229
  %v369 = vpop.f32.mrb[0].mxu0
  %v370 = vadd.f32 %v80, %v369
  %v371 = vpop.f32.mrb[0].mxu0
  %v372 = vpop.f32.mrb[0].mxu0
  %v373 = vadd.f32 %v80, %v372
  %v374 = vpop.f32.mrb[0].mxu0
  %375 = vmatprep.mubr.bf16.mxu0 0
  %376 = vmatmul.mubr.bf16.gmra.mrb[0].mxu0 %v232
  %v377 = vpop.f32.mrb[0].mxu0
  %v378 = vadd.f32 %v80, %v377
  %v379 = vpop.f32.mrb[0].mxu0
  %v380 = vpop.f32.mrb[0].mxu0
  %v381 = vadd.f32 %v80, %v380
  %v382 = vpop.f32.mrb[0].mxu0
  %383 = vmatprep.mubr.bf16.mxu0 0
  %384 = vmatmul.mubr.bf16.gmra.mrb[0].mxu0 %v235
  %v385 = vpop.f32.mrb[0].mxu0
  %v386 = vadd.f32 %v80, %v385
  %v387 = vpop.f32.mrb[0].mxu0
  %v388 = vpop.f32.mrb[0].mxu0
  %v389 = vadd.f32 %v80, %v388
  %v390 = vpop.f32.mrb[0].mxu0
  %391 = vmatprep.mubr.bf16.mxu0 0
  %392 = vmatmul.mubr.bf16.gmra.mrb[0].mxu0 %v238
  %v393 = vpop.f32.mrb[0].mxu0
  %v394 = vadd.f32 %v80, %v393
  %v395 = vpop.f32.mrb[0].mxu0
  %v396 = vpop.f32.mrb[0].mxu0
  %v397 = vadd.f32 %v80, %v396
  %v398 = vpop.f32.mrb[0].mxu0
  %399 = vmatprep.mubr.bf16.mxu0 0
  %400 = vmatmul.mubr.bf16.gmra.mrb[0].mxu0 %v241
  %v401 = vpop.f32.mrb[0].mxu0
  %v402 = vadd.f32 %v80, %v401
  %v403 = vpop.f32.mrb[0].mxu0
  %v404 = vpop.f32.mrb[0].mxu0
  %v405 = vadd.f32 %v80, %v404
  %v406 = vpop.f32.mrb[0].mxu0
  %407 = vdwg.mxu0
  %v408 = vld [vmem:[%s2] sm:$0xf]
  %v409 = vld [vmem:[%s2 + $0x4] sm:$0xf]
  %v410 = vld [vmem:[%s2 + $0x8] sm:$0xf]
  %v411 = vld [vmem:[%s3] sm:$0x1]
  %v413 = vlaneseq
  %v414 = vshrl.u32 %v413, 7
  %v415 = vsub.s32 0, %v414
  %v416 = vrot.slane %v411, %v415
  %v421 = vunpack.c.l.b16 %v408
  %v422 = vunpack.c.l.b16 %v409
  %v423 = vunpack.c.l.b16 %v410
  %v424 = vpack.c.b16 %v422, %v421
  %v425 = vpack.c.b16 %v423, %v423
  %vm427 = vcmask 195584
  %v429 = vsel %vm427, %v146, 0
  %v432 = vsel %vm427, %v147, 0
  %v435 = vsel %vm427, %v148, 0
  %v438 = vsel %vm427, %v149, 0
  %v441 = vsel %vm427, %v150, 0
  %v444 = vsel %vm427, %v151, 0
  %v447 = vsel %vm427, %v152, 0
  %v450 = vsel %vm427, %v153, 0
  %v453 = vsel %vm427, %v154, 0
  %v456 = vsel %vm427, %v155, 0
  %v459 = vsel %vm427, %v156, 0
  %v462 = vsel %vm427, %v157, 0
  %v465 = vsel %vm427, %v158, 0
  %v468 = vsel %vm427, %v159, 0
  %v471 = vsel %vm427, %v160, 0
  %v474 = vsel %vm427, %v161, 0
  %v477 = vsel %vm243, %v425, 0
  %479 = vmatprep.subr.bf16.mxu0 0
  %480 = vmatpush1.bf16.msra.mxu0 %v424
  %481 = vmatprep.subr.bf16.mxu0 0
  %482 = vmatpush1.bf16.msra.mxu0 %v477
  %483 = vmatprep.subr.bf16.mxu0 0
  %484 = vmatpush1.bf16.msra.mxu0 0
  %485 = vmatprep.subr.bf16.mxu0 0
  %486 = vmatpush1.bf16.msra.mxu0 0
  %487 = vmatprep.subr.bf16.mxu0 0
  %488 = vmatpush1.bf16.msra.mxu0 0
  %489 = vmatprep.subr.bf16.mxu0 0
  %490 = vmatpush1.bf16.msra.mxu0 0
  %491 = vmatprep.subr.bf16.mxu0 0
  %492 = vmatpush1.bf16.msra.mxu0 0
  %493 = vmatprep.subr.bf16.mxu0 0
  %494 = vmatpush1.bf16.msra.mxu0 0
  %495 = vmatprep.subr.bf16.mxu0 0
  %496 = vmatpush1.bf16.msra.mxu0 0
  %497 = vmatprep.subr.bf16.mxu0 0
  %498 = vmatpush1.bf16.msra.mxu0 0
  %499 = vmatprep.subr.bf16.mxu0 0
  %500 = vmatpush1.bf16.msra.mxu0 0
  %501 = vmatprep.subr.bf16.mxu0 0
  %502 = vmatpush1.bf16.msra.mxu0 0
  %503 = vmatprep.subr.bf16.mxu0 0
  %504 = vmatpush1.bf16.msra.mxu0 0
  %505 = vmatprep.subr.bf16.mxu0 0
  %506 = vmatpush1.bf16.msra.mxu0 0
  %507 = vmatprep.subr.bf16.mxu0 0
  %508 = vmatpush1.bf16.msra.mxu0 0
  %509 = vmatprep.subr.bf16.mxu0 0
  %510 = vmatpush1.bf16.msra.mxu0 0
  %511 = vmatprep.mubr.bf16.mxu0 0
  %512 = vmatmul.mubr.bf16.gmra.mrb[0].mxu0 %v429
  %v513 = vpop.f32.mrb[0].mxu0
  %v514 = vadd.f32 %v416, %v513
  %v515 = vpop.f32.mrb[0].mxu0
  %v516 = vpop.f32.mrb[0].mxu0
  %v517 = vadd.f32 %v416, %v516
  %v518 = vpop.f32.mrb[0].mxu0
  %519 = vmatprep.mubr.bf16.mxu0 0
  %520 = vmatmul.mubr.bf16.gmra.mrb[0].mxu0 %v432
  %v521 = vpop.f32.mrb[0].mxu0
  %v522 = vadd.f32 %v416, %v521
  %v523 = vpop.f32.mrb[0].mxu0
  %v524 = vpop.f32.mrb[0].mxu0
  %v525 = vadd.f32 %v416, %v524
  %v526 = vpop.f32.mrb[0].mxu0
  %527 = vmatprep.mubr.bf16.mxu0 0
  %528 = vmatmul.mubr.bf16.gmra.mrb[0].mxu0 %v435
  %v529 = vpop.f32.mrb[0].mxu0
  %v530 = vadd.f32 %v416, %v529
  %v531 = vpop.f32.mrb[0].mxu0
  %v532 = vpop.f32.mrb[0].mxu0
  %v533 = vadd.f32 %v416, %v532
  %v534 = vpop.f32.mrb[0].mxu0
  %535 = vmatprep.mubr.bf16.mxu0 0
  %536 = vmatmul.mubr.bf16.gmra.mrb[0].mxu0 %v438
  %v537 = vpop.f32.mrb[0].mxu0
  %v538 = vadd.f32 %v416, %v537
  %v539 = vpop.f32.mrb[0].mxu0
  %v540 = vpop.f32.mrb[0].mxu0
  %v541 = vadd.f32 %v416, %v540
  %v542 = vpop.f32.mrb[0].mxu0
  %543 = vmatprep.mubr.bf16.mxu0 0
  %544 = vmatmul.mubr.bf16.gmra.mrb[0].mxu0 %v441
  %v545 = vpop.f32.mrb[0].mxu0
  %v546 = vadd.f32 %v416, %v545
  %v547 = vpop.f32.mrb[0].mxu0
  %v548 = vpop.f32.mrb[0].mxu0
  %v549 = vadd.f32 %v416, %v548
  %v550 = vpop.f32.mrb[0].mxu0
  %551 = vmatprep.mubr.bf16.mxu0 0
  %552 = vmatmul.mubr.bf16.gmra.mrb[0].mxu0 %v444
  %v553 = vpop.f32.mrb[0].mxu0
  %v554 = vadd.f32 %v416, %v553
  %v555 = vpop.f32.mrb[0].mxu0
  %v556 = vpop.f32.mrb[0].mxu0
  %v557 = vadd.f32 %v416, %v556
  %v558 = vpop.f32.mrb[0].mxu0
  %559 = vmatprep.mubr.bf16.mxu0 0
  %560 = vmatmul.mubr.bf16.gmra.mrb[0].mxu0 %v447
  %v561 = vpop.f32.mrb[0].mxu0
  %v562 = vadd.f32 %v416, %v561
  %v563 = vpop.f32.mrb[0].mxu0
  %v564 = vpop.f32.mrb[0].mxu0
  %v565 = vadd.f32 %v416, %v564
  %v566 = vpop.f32.mrb[0].mxu0
  %567 = vmatprep.mubr.bf16.mxu0 0
  %568 = vmatmul.mubr.bf16.gmra.mrb[0].mxu0 %v450
  %v569 = vpop.f32.mrb[0].mxu0
  %v570 = vadd.f32 %v416, %v569
  %v571 = vpop.f32.mrb[0].mxu0
  %v572 = vpop.f32.mrb[0].mxu0
  %v573 = vadd.f32 %v416, %v572
  %v574 = vpop.f32.mrb[0].mxu0
  %575 = vmatprep.mubr.bf16.mxu0 0
  %576 = vmatmul.mubr.bf16.gmra.mrb[0].mxu0 %v453
  %v577 = vpop.f32.mrb[0].mxu0
  %v578 = vadd.f32 %v416, %v577
  %v579 = vpop.f32.mrb[0].mxu0
  %v580 = vpop.f32.mrb[0].mxu0
  %v581 = vadd.f32 %v416, %v580
  %v582 = vpop.f32.mrb[0].mxu0
  %583 = vmatprep.mubr.bf16.mxu0 0
  %584 = vmatmul.mubr.bf16.gmra.mrb[0].mxu0 %v456
  %v585 = vpop.f32.mrb[0].mxu0
  %v586 = vadd.f32 %v416, %v585
  %v587 = vpop.f32.mrb[0].mxu0
  %v588 = vpop.f32.mrb[0].mxu0
  %v589 = vadd.f32 %v416, %v588
  %v590 = vpop.f32.mrb[0].mxu0
  %591 = vmatprep.mubr.bf16.mxu0 0
  %592 = vmatmul.mubr.bf16.gmra.mrb[0].mxu0 %v459
  %v593 = vpop.f32.mrb[0].mxu0
  %v594 = vadd.f32 %v416, %v593
  %v595 = vpop.f32.mrb[0].mxu0
  %v596 = vpop.f32.mrb[0].mxu0
  %v597 = vadd.f32 %v416, %v596
  %v598 = vpop.f32.mrb[0].mxu0
  %599 = vmatprep.mubr.bf16.mxu0 0
  %600 = vmatmul.mubr.bf16.gmra.mrb[0].mxu0 %v462
  %v601 = vpop.f32.mrb[0].mxu0
  %v602 = vadd.f32 %v416, %v601
  %v603 = vpop.f32.mrb[0].mxu0
  %v604 = vpop.f32.mrb[0].mxu0
  %v605 = vadd.f32 %v416, %v604
  %v606 = vpop.f32.mrb[0].mxu0
  %607 = vmatprep.mubr.bf16.mxu0 0
  %608 = vmatmul.mubr.bf16.gmra.mrb[0].mxu0 %v465
  %v609 = vpop.f32.mrb[0].mxu0
  %v610 = vadd.f32 %v416, %v609
  %v611 = vpop.f32.mrb[0].mxu0
  %v612 = vpop.f32.mrb[0].mxu0
  %v613 = vadd.f32 %v416, %v612
  %v614 = vpop.f32.mrb[0].mxu0
  %615 = vmatprep.mubr.bf16.mxu0 0
  %616 = vmatmul.mubr.bf16.gmra.mrb[0].mxu0 %v468
  %v617 = vpop.f32.mrb[0].mxu0
  %v618 = vadd.f32 %v416, %v617
  %v619 = vpop.f32.mrb[0].mxu0
  %v620 = vpop.f32.mrb[0].mxu0
  %v621 = vadd.f32 %v416, %v620
  %v622 = vpop.f32.mrb[0].mxu0
  %623 = vmatprep.mubr.bf16.mxu0 0
  %624 = vmatmul.mubr.bf16.gmra.mrb[0].mxu0 %v471
  %v625 = vpop.f32.mrb[0].mxu0
  %v626 = vadd.f32 %v416, %v625
  %v627 = vpop.f32.mrb[0].mxu0
  %v628 = vpop.f32.mrb[0].mxu0
  %v629 = vadd.f32 %v416, %v628
  %v630 = vpop.f32.mrb[0].mxu0
  %631 = vmatprep.mubr.bf16.mxu0 0
  %632 = vmatmul.mubr.bf16.gmra.mrb[0].mxu0 %v474
  %v633 = vpop.f32.mrb[0].mxu0
  %v634 = vadd.f32 %v416, %v633
  %v635 = vpop.f32.mrb[0].mxu0
  %v636 = vpop.f32.mrb[0].mxu0
  %v637 = vadd.f32 %v416, %v636
  %v638 = vpop.f32.mrb[0].mxu0
  %639 = vdwg.mxu0
  %v640 = vtanh.pop %v514
  %v641 = vtanh.pop %v517
  %v642 = vtanh.pop %v522
  %v643 = vtanh.pop %v525
  %v644 = vtanh.pop %v530
  %v645 = vtanh.pop %v533
  %v646 = vtanh.pop %v538
  %v647 = vtanh.pop %v541
  %v648 = vtanh.pop %v546
  %v649 = vtanh.pop %v549
  %v650 = vtanh.pop %v554
  %v651 = vtanh.pop %v557
  %v652 = vtanh.pop %v562
  %v653 = vtanh.pop %v565
  %v654 = vtanh.pop %v570
  %v655 = vtanh.pop %v573
  %v656 = vtanh.pop %v578
  %v657 = vtanh.pop %v581
  %v658 = vtanh.pop %v586
  %v659 = vtanh.pop %v589
  %v660 = vtanh.pop %v594
  %v661 = vtanh.pop %v597
  %v662 = vtanh.pop %v602
  %v663 = vtanh.pop %v605
  %v664 = vtanh.pop %v610
  %v665 = vtanh.pop %v613
  %v666 = vtanh.pop %v618
  %v667 = vtanh.pop %v621
  %v668 = vtanh.pop %v626
  %v669 = vtanh.pop %v629
  %v670 = vtanh.pop %v634
  %v671 = vtanh.pop %v637
  %v672 = vpack.c.bf16 %v641, %v640
  %v673 = vpack.c.bf16 %v643, %v642
  %v674 = vpack.c.bf16 %v645, %v644
  %v675 = vpack.c.bf16 %v647, %v646
  %v676 = vpack.c.bf16 %v649, %v648
  %v677 = vpack.c.bf16 %v651, %v650
  %v678 = vpack.c.bf16 %v653, %v652
  %v679 = vpack.c.bf16 %v655, %v654
  %v680 = vpack.c.bf16 %v657, %v656
  %v681 = vpack.c.bf16 %v659, %v658
  %v682 = vpack.c.bf16 %v661, %v660
  %v683 = vpack.c.bf16 %v663, %v662
  %v684 = vpack.c.bf16 %v665, %v664
  %v685 = vpack.c.bf16 %v667, %v666
  %v686 = vpack.c.bf16 %v669, %v668
  %v687 = vpack.c.bf16 %v671, %v670
  %v688 = vld [vmem:[%s4] sm:$0xf]
  %v689 = vld [vmem:[%s4 + $0x4] sm:$0xf]
  %v690 = vld [vmem:[%s4 + $0x8] sm:$0xf]
  %v691 = vld [vmem:[%s4 + $0xc] sm:$0xf]
  %v692 = vld [vmem:[%s5] sm:$0x1]
  %v694 = vlaneseq
  %v695 = vshrl.u32 %v694, 7
  %v696 = vsub.s32 0, %v695
  %v697 = vrot.slane %v692, %v696
  %v703 = vunpack.c.l.b16 %v688
  %v704 = vunpack.c.l.b16 %v689
  %v705 = vunpack.c.l.b16 %v690
  %v706 = vunpack.c.l.b16 %v691
  %v707 = vpack.c.b16 %v704, %v703
  %v708 = vpack.c.b16 %v706, %v705
  %vm711 = vcmask 261120
  %v713 = vsel %vm711, %v672, 0
  %v716 = vsel %vm711, %v673, 0
  %v719 = vsel %vm711, %v674, 0
  %v722 = vsel %vm711, %v675, 0
  %v725 = vsel %vm711, %v676, 0
  %v728 = vsel %vm711, %v677, 0
  %v731 = vsel %vm711, %v678, 0
  %v734 = vsel %vm711, %v679, 0
  %v737 = vsel %vm711, %v680, 0
  %v740 = vsel %vm711, %v681, 0
  %v743 = vsel %vm711, %v682, 0
  %v746 = vsel %vm711, %v683, 0
  %v749 = vsel %vm711, %v684, 0
  %v752 = vsel %vm711, %v685, 0
  %v755 = vsel %vm711, %v686, 0
  %v758 = vsel %vm711, %v687, 0
  %760 = vmatprep.subr.bf16.mxu0 0
  %761 = vmatpush1.bf16.msra.mxu0 %v707
  %762 = vmatprep.subr.bf16.mxu0 0
  %763 = vmatpush1.bf16.msra.mxu0 %v708
  %764 = vmatprep.subr.bf16.mxu0 0
  %765 = vmatpush1.bf16.msra.mxu0 0
  %766 = vmatprep.subr.bf16.mxu0 0
  %767 = vmatpush1.bf16.msra.mxu0 0
  %768 = vmatprep.subr.bf16.mxu0 0
  %769 = vmatpush1.bf16.msra.mxu0 0
  %770 = vmatprep.subr.bf16.mxu0 0
  %771 = vmatpush1.bf16.msra.mxu0 0
  %772 = vmatprep.subr.bf16.mxu0 0
  %773 = vmatpush1.bf16.msra.mxu0 0
  %774 = vmatprep.subr.bf16.mxu0 0
  %775 = vmatpush1.bf16.msra.mxu0 0
  %776 = vmatprep.subr.bf16.mxu0 0
  %777 = vmatpush1.bf16.msra.mxu0 0
  %778 = vmatprep.subr.bf16.mxu0 0
  %779 = vmatpush1.bf16.msra.mxu0 0
  %780 = vmatprep.subr.bf16.mxu0 0
  %781 = vmatpush1.bf16.msra.mxu0 0
  %782 = vmatprep.subr.bf16.mxu0 0
  %783 = vmatpush1.bf16.msra.mxu0 0
  %784 = vmatprep.subr.bf16.mxu0 0
  %785 = vmatpush1.bf16.msra.mxu0 0
  %786 = vmatprep.subr.bf16.mxu0 0
  %787 = vmatpush1.bf16.msra.mxu0 0
  %788 = vmatprep.subr.bf16.mxu0 0
  %789 = vmatpush1.bf16.msra.mxu0 0
  %790 = vmatprep.subr.bf16.mxu0 0
  %791 = vmatpush1.bf16.msra.mxu0 0
  %792 = vmatprep.mubr.bf16.mxu0 0
  %793 = vmatmul.mubr.bf16.gmra.mrb[0].mxu0 %v713
  %v794 = vpop.f32.mrb[0].mxu0
  %v795 = vadd.f32 %v697, %v794
  %v796 = vpop.f32.mrb[0].mxu0
  %v797 = vpop.f32.mrb[0].mxu0
  %v798 = vadd.f32 %v697, %v797
  %v799 = vpop.f32.mrb[0].mxu0
  %800 = vmatprep.mubr.bf16.mxu0 0
  %801 = vmatmul.mubr.bf16.gmra.mrb[0].mxu0 %v716
  %v802 = vpop.f32.mrb[0].mxu0
  %v803 = vadd.f32 %v697, %v802
  %v804 = vpop.f32.mrb[0].mxu0
  %v805 = vpop.f32.mrb[0].mxu0
  %v806 = vadd.f32 %v697, %v805
  %v807 = vpop.f32.mrb[0].mxu0
  %808 = vmatprep.mubr.bf16.mxu0 0
  %809 = vmatmul.mubr.bf16.gmra.mrb[0].mxu0 %v719
  %v810 = vpop.f32.mrb[0].mxu0
  %v811 = vadd.f32 %v697, %v810
  %v812 = vpop.f32.mrb[0].mxu0
  %v813 = vpop.f32.mrb[0].mxu0
  %v814 = vadd.f32 %v697, %v813
  %v815 = vpop.f32.mrb[0].mxu0
  %816 = vmatprep.mubr.bf16.mxu0 0
  %817 = vmatmul.mubr.bf16.gmra.mrb[0].mxu0 %v722
  %v818 = vpop.f32.mrb[0].mxu0
  %v819 = vadd.f32 %v697, %v818
  %v820 = vpop.f32.mrb[0].mxu0
  %v821 = vpop.f32.mrb[0].mxu0
  %v822 = vadd.f32 %v697, %v821
  %v823 = vpop.f32.mrb[0].mxu0
  %824 = vmatprep.mubr.bf16.mxu0 0
  %825 = vmatmul.mubr.bf16.gmra.mrb[0].mxu0 %v725
  %v826 = vpop.f32.mrb[0].mxu0
  %v827 = vadd.f32 %v697, %v826
  %v828 = vpop.f32.mrb[0].mxu0
  %v829 = vpop.f32.mrb[0].mxu0
  %v830 = vadd.f32 %v697, %v829
  %v831 = vpop.f32.mrb[0].mxu0
  %832 = vmatprep.mubr.bf16.mxu0 0
  %833 = vmatmul.mubr.bf16.gmra.mrb[0].mxu0 %v728
  %v834 = vpop.f32.mrb[0].mxu0
  %v835 = vadd.f32 %v697, %v834
  %v836 = vpop.f32.mrb[0].mxu0
  %v837 = vpop.f32.mrb[0].mxu0
  %v838 = vadd.f32 %v697, %v837
  %v839 = vpop.f32.mrb[0].mxu0
  %840 = vmatprep.mubr.bf16.mxu0 0
  %841 = vmatmul.mubr.bf16.gmra.mrb[0].mxu0 %v731
  %v842 = vpop.f32.mrb[0].mxu0
  %v843 = vadd.f32 %v697, %v842
  %v844 = vpop.f32.mrb[0].mxu0
  %v845 = vpop.f32.mrb[0].mxu0
  %v846 = vadd.f32 %v697, %v845
  %v847 = vpop.f32.mrb[0].mxu0
  %848 = vmatprep.mubr.bf16.mxu0 0
  %849 = vmatmul.mubr.bf16.gmra.mrb[0].mxu0 %v734
  %v850 = vpop.f32.mrb[0].mxu0
  %v851 = vadd.f32 %v697, %v850
  %v852 = vpop.f32.mrb[0].mxu0
  %v853 = vpop.f32.mrb[0].mxu0
  %v854 = vadd.f32 %v697, %v853
  %v855 = vpop.f32.mrb[0].mxu0
  %856 = vmatprep.mubr.bf16.mxu0 0
  %857 = vmatmul.mubr.bf16.gmra.mrb[0].mxu0 %v737
  %v858 = vpop.f32.mrb[0].mxu0
  %v859 = vadd.f32 %v697, %v858
  %v860 = vpop.f32.mrb[0].mxu0
  %v861 = vpop.f32.mrb[0].mxu0
  %v862 = vadd.f32 %v697, %v861
  %v863 = vpop.f32.mrb[0].mxu0
  %864 = vmatprep.mubr.bf16.mxu0 0
  %865 = vmatmul.mubr.bf16.gmra.mrb[0].mxu0 %v740
  %v866 = vpop.f32.mrb[0].mxu0
  %v867 = vadd.f32 %v697, %v866
  %v868 = vpop.f32.mrb[0].mxu0
  %v869 = vpop.f32.mrb[0].mxu0
  %v870 = vadd.f32 %v697, %v869
  %v871 = vpop.f32.mrb[0].mxu0
  %872 = vmatprep.mubr.bf16.mxu0 0
  %873 = vmatmul.mubr.bf16.gmra.mrb[0].mxu0 %v743
  %v874 = vpop.f32.mrb[0].mxu0
  %v875 = vadd.f32 %v697, %v874
  %v876 = vpop.f32.mrb[0].mxu0
  %v877 = vpop.f32.mrb[0].mxu0
  %v878 = vadd.f32 %v697, %v877
  %v879 = vpop.f32.mrb[0].mxu0
  %880 = vmatprep.mubr.bf16.mxu0 0
  %881 = vmatmul.mubr.bf16.gmra.mrb[0].mxu0 %v746
  %v882 = vpop.f32.mrb[0].mxu0
  %v883 = vadd.f32 %v697, %v882
  %v884 = vpop.f32.mrb[0].mxu0
  %v885 = vpop.f32.mrb[0].mxu0
  %v886 = vadd.f32 %v697, %v885
  %v887 = vpop.f32.mrb[0].mxu0
  %888 = vmatprep.mubr.bf16.mxu0 0
  %889 = vmatmul.mubr.bf16.gmra.mrb[0].mxu0 %v749
  %v890 = vpop.f32.mrb[0].mxu0
  %v891 = vadd.f32 %v697, %v890
  %v892 = vpop.f32.mrb[0].mxu0
  %v893 = vpop.f32.mrb[0].mxu0
  %v894 = vadd.f32 %v697, %v893
  %v895 = vpop.f32.mrb[0].mxu0
  %896 = vmatprep.mubr.bf16.mxu0 0
  %897 = vmatmul.mubr.bf16.gmra.mrb[0].mxu0 %v752
  %v898 = vpop.f32.mrb[0].mxu0
  %v899 = vadd.f32 %v697, %v898
  %v900 = vpop.f32.mrb[0].mxu0
  %v901 = vpop.f32.mrb[0].mxu0
  %v902 = vadd.f32 %v697, %v901
  %v903 = vpop.f32.mrb[0].mxu0
  %904 = vmatprep.mubr.bf16.mxu0 0
  %905 = vmatmul.mubr.bf16.gmra.mrb[0].mxu0 %v755
  %v906 = vpop.f32.mrb[0].mxu0
  %v907 = vadd.f32 %v697, %v906
  %v908 = vpop.f32.mrb[0].mxu0
  %v909 = vpop.f32.mrb[0].mxu0
  %v910 = vadd.f32 %v697, %v909
  %v911 = vpop.f32.mrb[0].mxu0
  %912 = vmatprep.mubr.bf16.mxu0 0
  %913 = vmatmul.mubr.bf16.gmra.mrb[0].mxu0 %v758
  %v914 = vpop.f32.mrb[0].mxu0
  %v915 = vadd.f32 %v697, %v914
  %v916 = vpop.f32.mrb[0].mxu0
  %v917 = vpop.f32.mrb[0].mxu0
  %v918 = vadd.f32 %v697, %v917
  %v919 = vpop.f32.mrb[0].mxu0
  %920 = vdwg.mxu0
  %v921 = vld [vmem:[%s1] sm:$0xff]
  %v922 = vld [vmem:[%s1 + $0x8] sm:$0xff]
  %v923 = vld [vmem:[%s1 + $0x10] sm:$0xff]
  %v924 = vld [vmem:[%s1 + $0x18] sm:$0xff]
  %v925 = vld [vmem:[%s1 + $0x20] sm:$0xff]
  %v926 = vld [vmem:[%s1 + $0x28] sm:$0xff]
  %v927 = vld [vmem:[%s1 + $0x30] sm:$0xff]
  %v928 = vld [vmem:[%s1 + $0x38] sm:$0xff]
  %v929 = vld [vmem:[%s1 + $0x40] sm:$0xff]
  %v930 = vld [vmem:[%s1 + $0x48] sm:$0xff]
  %v931 = vld [vmem:[%s1 + $0x50] sm:$0xff]
  %v932 = vld [vmem:[%s1 + $0x58] sm:$0xff]
  %v933 = vld [vmem:[%s1 + $0x60] sm:$0xff]
  %v934 = vld [vmem:[%s1 + $0x68] sm:$0xff]
  %v935 = vld [vmem:[%s1 + $0x70] sm:$0xff]
  %v936 = vld [vmem:[%s1 + $0x78] sm:$0xff]
  %v937 = vld [vmem:[%s1 + $0x80] sm:$0xff]
  %v938 = vld [vmem:[%s1 + $0x88] sm:$0xff]
  %v939 = vld [vmem:[%s1 + $0x90] sm:$0xff]
  %v940 = vld [vmem:[%s1 + $0x98] sm:$0xff]
  %v941 = vld [vmem:[%s1 + $0xa0] sm:$0xff]
  %v942 = vld [vmem:[%s1 + $0xa8] sm:$0xff]
  %v943 = vld [vmem:[%s1 + $0xb0] sm:$0xff]
  %v944 = vld [vmem:[%s1 + $0xb8] sm:$0xff]
  %v945 = vld [vmem:[%s1 + $0xc0] sm:$0xff]
  %v946 = vld [vmem:[%s1 + $0xc8] sm:$0xff]
  %v947 = vld [vmem:[%s1 + $0xd0] sm:$0xff]
  %v948 = vld [vmem:[%s1 + $0xd8] sm:$0xff]
  %v949 = vld [vmem:[%s1 + $0xe0] sm:$0xff]
  %v950 = vld [vmem:[%s1 + $0xe8] sm:$0xff]
  %v951 = vld [vmem:[%s1 + $0xf0] sm:$0xff]
  %v952 = vld [vmem:[%s1 + $0xf8] sm:$0xff]
  %v953 = vmul.f32 %v795, 0.5
  %v954 = vmul.f32 %v798, 0.5
  %v955 = vmul.f32 %v803, 0.5
  %v956 = vmul.f32 %v806, 0.5
  %v957 = vmul.f32 %v811, 0.5
  %v958 = vmul.f32 %v814, 0.5
  %v959 = vmul.f32 %v819, 0.5
  %v960 = vmul.f32 %v822, 0.5
  %v961 = vmul.f32 %v827, 0.5
  %v962 = vmul.f32 %v830, 0.5
  %v963 = vmul.f32 %v835, 0.5
  %v964 = vmul.f32 %v838, 0.5
  %v965 = vmul.f32 %v843, 0.5
  %v966 = vmul.f32 %v846, 0.5
  %v967 = vmul.f32 %v851, 0.5
  %v968 = vmul.f32 %v854, 0.5
  %v969 = vmul.f32 %v859, 0.5
  %v970 = vmul.f32 %v862, 0.5
  %v971 = vmul.f32 %v867, 0.5
  %v972 = vmul.f32 %v870, 0.5
  %v973 = vmul.f32 %v875, 0.5
  %v974 = vmul.f32 %v878, 0.5
  %v975 = vmul.f32 %v883, 0.5
  %v976 = vmul.f32 %v886, 0.5
  %v977 = vmul.f32 %v891, 0.5
  %v978 = vmul.f32 %v894, 0.5
  %v979 = vmul.f32 %v899, 0.5
  %v980 = vmul.f32 %v902, 0.5
  %v981 = vmul.f32 %v907, 0.5
  %v982 = vmul.f32 %v910, 0.5
  %v983 = vmul.f32 %v915, 0.5
  %v984 = vmul.f32 %v918, 0.5
  %v985 = vmul.f32 %v953, 1.442695
  %v986 = vpow.pop %v985
  %v987 = vmul.f32 %v954, 1.442695
  %v988 = vpow.pop %v987
  %v989 = vmul.f32 %v955, 1.442695
  %v990 = vpow.pop %v989
  %v991 = vmul.f32 %v956, 1.442695
  %v992 = vpow.pop %v991
  %v993 = vmul.f32 %v957, 1.442695
  %v994 = vpow.pop %v993
  %v995 = vmul.f32 %v958, 1.442695
  %v996 = vpow.pop %v995
  %v997 = vmul.f32 %v959, 1.442695
  %v998 = vpow.pop %v997
  %v999 = vmul.f32 %v960, 1.442695
  %v1000 = vpow.pop %v999
  %v1001 = vmul.f32 %v961, 1.442695
  %v1002 = vpow.pop %v1001
  %v1003 = vmul.f32 %v962, 1.442695
  %v1004 = vpow.pop %v1003
  %v1005 = vmul.f32 %v963, 1.442695
  %v1006 = vpow.pop %v1005
  %v1007 = vmul.f32 %v964, 1.442695
  %v1008 = vpow.pop %v1007
  %v1009 = vmul.f32 %v965, 1.442695
  %v1010 = vpow.pop %v1009
  %v1011 = vmul.f32 %v966, 1.442695
  %v1012 = vpow.pop %v1011
  %v1013 = vmul.f32 %v967, 1.442695
  %v1014 = vpow.pop %v1013
  %v1015 = vmul.f32 %v968, 1.442695
  %v1016 = vpow.pop %v1015
  %v1017 = vmul.f32 %v969, 1.442695
  %v1018 = vpow.pop %v1017
  %v1019 = vmul.f32 %v970, 1.442695
  %v1020 = vpow.pop %v1019
  %v1021 = vmul.f32 %v971, 1.442695
  %v1022 = vpow.pop %v1021
  %v1023 = vmul.f32 %v972, 1.442695
  %v1024 = vpow.pop %v1023
  %v1025 = vmul.f32 %v973, 1.442695
  %v1026 = vpow.pop %v1025
  %v1027 = vmul.f32 %v974, 1.442695
  %v1028 = vpow.pop %v1027
  %v1029 = vmul.f32 %v975, 1.442695
  %v1030 = vpow.pop %v1029
  %v1031 = vmul.f32 %v976, 1.442695
  %v1032 = vpow.pop %v1031
  %v1033 = vmul.f32 %v977, 1.442695
  %v1034 = vpow.pop %v1033
  %v1035 = vmul.f32 %v978, 1.442695
  %v1036 = vpow.pop %v1035
  %v1037 = vmul.f32 %v979, 1.442695
  %v1038 = vpow.pop %v1037
  %v1039 = vmul.f32 %v980, 1.442695
  %v1040 = vpow.pop %v1039
  %v1041 = vmul.f32 %v981, 1.442695
  %v1042 = vpow.pop %v1041
  %v1043 = vmul.f32 %v982, 1.442695
  %v1044 = vpow.pop %v1043
  %v1045 = vmul.f32 %v983, 1.442695
  %v1046 = vpow.pop %v1045
  %v1047 = vmul.f32 %v984, 1.442695
  %v1048 = vpow.pop %v1047
  %1081 = vrot.lane.b32.xlu0 %v986, 120
  %v1082 = vpop.permute.xlu0 %1081
  %1083 = vrot.lane.b32.xlu0 %v988, 120
  %v1084 = vpop.permute.xlu0 %1083
  %1085 = vrot.lane.b32.xlu0 %v990, 120
  %v1086 = vpop.permute.xlu0 %1085
  %1087 = vrot.lane.b32.xlu0 %v992, 120
  %v1088 = vpop.permute.xlu0 %1087
  %1089 = vrot.lane.b32.xlu0 %v994, 120
  %v1090 = vpop.permute.xlu0 %1089
  %1091 = vrot.lane.b32.xlu0 %v996, 120
  %v1092 = vpop.permute.xlu0 %1091
  %1093 = vrot.lane.b32.xlu0 %v998, 120
  %v1094 = vpop.permute.xlu0 %1093
  %1095 = vrot.lane.b32.xlu0 %v1000, 120
  %v1096 = vpop.permute.xlu0 %1095
  %1097 = vrot.lane.b32.xlu0 %v1002, 120
  %v1098 = vpop.permute.xlu0 %1097
  %1099 = vrot.lane.b32.xlu0 %v1004, 120
  %v1100 = vpop.permute.xlu0 %1099
  %1101 = vrot.lane.b32.xlu0 %v1006, 120
  %v1102 = vpop.permute.xlu0 %1101
  %1103 = vrot.lane.b32.xlu0 %v1008, 120
  %v1104 = vpop.permute.xlu0 %1103
  %1105 = vrot.lane.b32.xlu0 %v1010, 120
  %v1106 = vpop.permute.xlu0 %1105
  %1107 = vrot.lane.b32.xlu0 %v1012, 120
  %v1108 = vpop.permute.xlu0 %1107
  %1109 = vrot.lane.b32.xlu0 %v1014, 120
  %v1110 = vpop.permute.xlu0 %1109
  %1111 = vrot.lane.b32.xlu0 %v1016, 120
  %v1112 = vpop.permute.xlu0 %1111
  %1113 = vrot.lane.b32.xlu0 %v1018, 120
  %v1114 = vpop.permute.xlu0 %1113
  %1115 = vrot.lane.b32.xlu0 %v1020, 120
  %v1116 = vpop.permute.xlu0 %1115
  %1117 = vrot.lane.b32.xlu0 %v1022, 120
  %v1118 = vpop.permute.xlu0 %1117
  %1119 = vrot.lane.b32.xlu0 %v1024, 120
  %v1120 = vpop.permute.xlu0 %1119
  %1121 = vrot.lane.b32.xlu0 %v1026, 120
  %v1122 = vpop.permute.xlu0 %1121
  %1123 = vrot.lane.b32.xlu0 %v1028, 120
  %v1124 = vpop.permute.xlu0 %1123
  %1125 = vrot.lane.b32.xlu0 %v1030, 120
  %v1126 = vpop.permute.xlu0 %1125
  %1127 = vrot.lane.b32.xlu0 %v1032, 120
  %v1128 = vpop.permute.xlu0 %1127
  %1129 = vrot.lane.b32.xlu0 %v1034, 120
  %v1130 = vpop.permute.xlu0 %1129
  %1131 = vrot.lane.b32.xlu0 %v1036, 120
  %v1132 = vpop.permute.xlu0 %1131
  %1133 = vrot.lane.b32.xlu0 %v1038, 120
  %v1134 = vpop.permute.xlu0 %1133
  %1135 = vrot.lane.b32.xlu0 %v1040, 120
  %v1136 = vpop.permute.xlu0 %1135
  %1137 = vrot.lane.b32.xlu0 %v1042, 120
  %v1138 = vpop.permute.xlu0 %1137
  %1139 = vrot.lane.b32.xlu0 %v1044, 120
  %v1140 = vpop.permute.xlu0 %1139
  %1141 = vrot.lane.b32.xlu0 %v1046, 120
  %v1142 = vpop.permute.xlu0 %1141
  %1143 = vrot.lane.b32.xlu0 %v1048, 120
  %v1144 = vpop.permute.xlu0 %1143
  %v1177 = vmul.f32 %v921, %v1082
  %v1178 = vmul.f32 %v922, %v1084
  %v1179 = vmul.f32 %v923, %v1086
  %v1180 = vmul.f32 %v924, %v1088
  %v1181 = vmul.f32 %v925, %v1090
  %v1182 = vmul.f32 %v926, %v1092
  %v1183 = vmul.f32 %v927, %v1094
  %v1184 = vmul.f32 %v928, %v1096
  %v1185 = vmul.f32 %v929, %v1098
  %v1186 = vmul.f32 %v930, %v1100
  %v1187 = vmul.f32 %v931, %v1102
  %v1188 = vmul.f32 %v932, %v1104
  %v1189 = vmul.f32 %v933, %v1106
  %v1190 = vmul.f32 %v934, %v1108
  %v1191 = vmul.f32 %v935, %v1110
  %v1192 = vmul.f32 %v936, %v1112
  %v1193 = vmul.f32 %v937, %v1114
  %v1194 = vmul.f32 %v938, %v1116
  %v1195 = vmul.f32 %v939, %v1118
  %v1196 = vmul.f32 %v940, %v1120
  %v1197 = vmul.f32 %v941, %v1122
  %v1198 = vmul.f32 %v942, %v1124
  %v1199 = vmul.f32 %v943, %v1126
  %v1200 = vmul.f32 %v944, %v1128
  %v1201 = vmul.f32 %v945, %v1130
  %v1202 = vmul.f32 %v946, %v1132
  %v1203 = vmul.f32 %v947, %v1134
  %v1204 = vmul.f32 %v948, %v1136
  %v1205 = vmul.f32 %v949, %v1138
  %v1206 = vmul.f32 %v950, %v1140
  %v1207 = vmul.f32 %v951, %v1142
  %v1208 = vmul.f32 %v952, %v1144
  %v1209 = vadd.f32 %v795, %v1177
  %v1210 = vadd.f32 %v798, %v1178
  %v1211 = vadd.f32 %v803, %v1179
  %v1212 = vadd.f32 %v806, %v1180
  %v1213 = vadd.f32 %v811, %v1181
  %v1214 = vadd.f32 %v814, %v1182
  %v1215 = vadd.f32 %v819, %v1183
  %v1216 = vadd.f32 %v822, %v1184
  %v1217 = vadd.f32 %v827, %v1185
  %v1218 = vadd.f32 %v830, %v1186
  %v1219 = vadd.f32 %v835, %v1187
  %v1220 = vadd.f32 %v838, %v1188
  %v1221 = vadd.f32 %v843, %v1189
  %v1222 = vadd.f32 %v846, %v1190
  %v1223 = vadd.f32 %v851, %v1191
  %v1224 = vadd.f32 %v854, %v1192
  %v1225 = vadd.f32 %v859, %v1193
  %v1226 = vadd.f32 %v862, %v1194
  %v1227 = vadd.f32 %v867, %v1195
  %v1228 = vadd.f32 %v870, %v1196
  %v1229 = vadd.f32 %v875, %v1197
  %v1230 = vadd.f32 %v878, %v1198
  %v1231 = vadd.f32 %v883, %v1199
  %v1232 = vadd.f32 %v886, %v1200
  %v1233 = vadd.f32 %v891, %v1201
  %v1234 = vadd.f32 %v894, %v1202
  %v1235 = vadd.f32 %v899, %v1203
  %v1236 = vadd.f32 %v902, %v1204
  %v1237 = vadd.f32 %v907, %v1205
  %v1238 = vadd.f32 %v910, %v1206
  %v1239 = vadd.f32 %v915, %v1207
  %v1240 = vadd.f32 %v918, %v1208
  %v1241 = vpack.c.bf16 %v1210, %v1209
  %v1242 = vpack.c.bf16 %v1212, %v1211
  %v1243 = vpack.c.bf16 %v1214, %v1213
  %v1244 = vpack.c.bf16 %v1216, %v1215
  %v1245 = vpack.c.bf16 %v1218, %v1217
  %v1246 = vpack.c.bf16 %v1220, %v1219
  %v1247 = vpack.c.bf16 %v1222, %v1221
  %v1248 = vpack.c.bf16 %v1224, %v1223
  %v1249 = vpack.c.bf16 %v1226, %v1225
  %v1250 = vpack.c.bf16 %v1228, %v1227
  %v1251 = vpack.c.bf16 %v1230, %v1229
  %v1252 = vpack.c.bf16 %v1232, %v1231
  %v1253 = vpack.c.bf16 %v1234, %v1233
  %v1254 = vpack.c.bf16 %v1236, %v1235
  %v1255 = vpack.c.bf16 %v1238, %v1237
  %v1256 = vpack.c.bf16 %v1240, %v1239
  %v1257 = vld [vmem:[%s6] sm:$0xf]
  %v1259 = vsel %vm194, %v1241, 0
  %v1262 = vsel %vm194, %v1242, 0
  %v1265 = vsel %vm194, %v1243, 0
  %v1268 = vsel %vm194, %v1244, 0
  %v1271 = vsel %vm194, %v1245, 0
  %v1274 = vsel %vm194, %v1246, 0
  %v1277 = vsel %vm194, %v1247, 0
  %v1280 = vsel %vm194, %v1248, 0
  %v1283 = vsel %vm194, %v1249, 0
  %v1286 = vsel %vm194, %v1250, 0
  %v1289 = vsel %vm194, %v1251, 0
  %v1292 = vsel %vm194, %v1252, 0
  %v1295 = vsel %vm194, %v1253, 0
  %v1298 = vsel %vm194, %v1254, 0
  %v1301 = vsel %vm194, %v1255, 0
  %v1304 = vsel %vm194, %v1256, 0
  %v1307 = vsel %vm243, %v1257, 0
  %1309 = vmatprep.subr.bf16.mxu0 0
  %1310 = vmatpush1.bf16.msra.mxu0 %v1307
  %1311 = vmatprep.subr.bf16.mxu0 0
  %1312 = vmatpush1.bf16.msra.mxu0 0
  %1313 = vmatprep.subr.bf16.mxu0 0
  %1314 = vmatpush1.bf16.msra.mxu0 0
  %1315 = vmatprep.subr.bf16.mxu0 0
  %1316 = vmatpush1.bf16.msra.mxu0 0
  %1317 = vmatprep.subr.bf16.mxu0 0
  %1318 = vmatpush1.bf16.msra.mxu0 0
  %1319 = vmatprep.subr.bf16.mxu0 0
  %1320 = vmatpush1.bf16.msra.mxu0 0
  %1321 = vmatprep.subr.bf16.mxu0 0
  %1322 = vmatpush1.bf16.msra.mxu0 0
  %1323 = vmatprep.subr.bf16.mxu0 0
  %1324 = vmatpush1.bf16.msra.mxu0 0
  %1325 = vmatprep.subr.bf16.mxu0 0
  %1326 = vmatpush1.bf16.msra.mxu0 0
  %1327 = vmatprep.subr.bf16.mxu0 0
  %1328 = vmatpush1.bf16.msra.mxu0 0
  %1329 = vmatprep.subr.bf16.mxu0 0
  %1330 = vmatpush1.bf16.msra.mxu0 0
  %1331 = vmatprep.subr.bf16.mxu0 0
  %1332 = vmatpush1.bf16.msra.mxu0 0
  %1333 = vmatprep.subr.bf16.mxu0 0
  %1334 = vmatpush1.bf16.msra.mxu0 0
  %1335 = vmatprep.subr.bf16.mxu0 0
  %1336 = vmatpush1.bf16.msra.mxu0 0
  %1337 = vmatprep.subr.bf16.mxu0 0
  %1338 = vmatpush1.bf16.msra.mxu0 0
  %1339 = vmatprep.subr.bf16.mxu0 0
  %1340 = vmatpush1.bf16.msra.mxu0 0
  %1341 = vmatprep.mubr.bf16.mxu0 0
  %1342 = vmatmul.mubr.bf16.gmra.mrb[0].mxu0 %v1259
  %v1343 = vpop.f32.mrb[0].mxu0
  %v1344 = vadd.f32 %v282, %v1343
  %v1345 = vpop.f32.mrb[0].mxu0
  %v1346 = vpop.f32.mrb[0].mxu0
  %v1347 = vadd.f32 %v285, %v1346
  %v1348 = vpop.f32.mrb[0].mxu0
  %1349 = vmatprep.mubr.bf16.mxu0 0
  %1350 = vmatmul.mubr.bf16.gmra.mrb[0].mxu0 %v1262
  %v1351 = vpop.f32.mrb[0].mxu0
  %v1352 = vadd.f32 %v290, %v1351
  %v1353 = vpop.f32.mrb[0].mxu0
  %v1354 = vpop.f32.mrb[0].mxu0
  %v1355 = vadd.f32 %v293, %v1354
  %v1356 = vpop.f32.mrb[0].mxu0
  %1357 = vmatprep.mubr.bf16.mxu0 0
  %1358 = vmatmul.mubr.bf16.gmra.mrb[0].mxu0 %v1265
  %v1359 = vpop.f32.mrb[0].mxu0
  %v1360 = vadd.f32 %v298, %v1359
  %v1361 = vpop.f32.mrb[0].mxu0
  %v1362 = vpop.f32.mrb[0].mxu0
  %v1363 = vadd.f32 %v301, %v1362
  %v1364 = vpop.f32.mrb[0].mxu0
  %1365 = vmatprep.mubr.bf16.mxu0 0
  %1366 = vmatmul.mubr.bf16.gmra.mrb[0].mxu0 %v1268
  %v1367 = vpop.f32.mrb[0].mxu0
  %v1368 = vadd.f32 %v306, %v1367
  %v1369 = vpop.f32.mrb[0].mxu0
  %v1370 = vpop.f32.mrb[0].mxu0
  %v1371 = vadd.f32 %v309, %v1370
  %v1372 = vpop.f32.mrb[0].mxu0
  %1373 = vmatprep.mubr.bf16.mxu0 0
  %1374 = vmatmul.mubr.bf16.gmra.mrb[0].mxu0 %v1271
  %v1375 = vpop.f32.mrb[0].mxu0
  %v1376 = vadd.f32 %v314, %v1375
  %v1377 = vpop.f32.mrb[0].mxu0
  %v1378 = vpop.f32.mrb[0].mxu0
  %v1379 = vadd.f32 %v317, %v1378
  %v1380 = vpop.f32.mrb[0].mxu0
  %1381 = vmatprep.mubr.bf16.mxu0 0
  %1382 = vmatmul.mubr.bf16.gmra.mrb[0].mxu0 %v1274
  %v1383 = vpop.f32.mrb[0].mxu0
  %v1384 = vadd.f32 %v322, %v1383
  %v1385 = vpop.f32.mrb[0].mxu0
  %v1386 = vpop.f32.mrb[0].mxu0
  %v1387 = vadd.f32 %v325, %v1386
  %v1388 = vpop.f32.mrb[0].mxu0
  %1389 = vmatprep.mubr.bf16.mxu0 0
  %1390 = vmatmul.mubr.bf16.gmra.mrb[0].mxu0 %v1277
  %v1391 = vpop.f32.mrb[0].mxu0
  %v1392 = vadd.f32 %v330, %v1391
  %v1393 = vpop.f32.mrb[0].mxu0
  %v1394 = vpop.f32.mrb[0].mxu0
  %v1395 = vadd.f32 %v333, %v1394
  %v1396 = vpop.f32.mrb[0].mxu0
  %1397 = vmatprep.mubr.bf16.mxu0 0
  %1398 = vmatmul.mubr.bf16.gmra.mrb[0].mxu0 %v1280
  %v1399 = vpop.f32.mrb[0].mxu0
  %v1400 = vadd.f32 %v338, %v1399
  %v1401 = vpop.f32.mrb[0].mxu0
  %v1402 = vpop.f32.mrb[0].mxu0
  %v1403 = vadd.f32 %v341, %v1402
  %v1404 = vpop.f32.mrb[0].mxu0
  %1405 = vmatprep.mubr.bf16.mxu0 0
  %1406 = vmatmul.mubr.bf16.gmra.mrb[0].mxu0 %v1283
  %v1407 = vpop.f32.mrb[0].mxu0
  %v1408 = vadd.f32 %v346, %v1407
  %v1409 = vpop.f32.mrb[0].mxu0
  %v1410 = vpop.f32.mrb[0].mxu0
  %v1411 = vadd.f32 %v349, %v1410
  %v1412 = vpop.f32.mrb[0].mxu0
  %1413 = vmatprep.mubr.bf16.mxu0 0
  %1414 = vmatmul.mubr.bf16.gmra.mrb[0].mxu0 %v1286
  %v1415 = vpop.f32.mrb[0].mxu0
  %v1416 = vadd.f32 %v354, %v1415
  %v1417 = vpop.f32.mrb[0].mxu0
  %v1418 = vpop.f32.mrb[0].mxu0
  %v1419 = vadd.f32 %v357, %v1418
  %v1420 = vpop.f32.mrb[0].mxu0
  %1421 = vmatprep.mubr.bf16.mxu0 0
  %1422 = vmatmul.mubr.bf16.gmra.mrb[0].mxu0 %v1289
  %v1423 = vpop.f32.mrb[0].mxu0
  %v1424 = vadd.f32 %v362, %v1423
  %v1425 = vpop.f32.mrb[0].mxu0
  %v1426 = vpop.f32.mrb[0].mxu0
  %v1427 = vadd.f32 %v365, %v1426
  %v1428 = vpop.f32.mrb[0].mxu0
  %1429 = vmatprep.mubr.bf16.mxu0 0
  %1430 = vmatmul.mubr.bf16.gmra.mrb[0].mxu0 %v1292
  %v1431 = vpop.f32.mrb[0].mxu0
  %v1432 = vadd.f32 %v370, %v1431
  %v1433 = vpop.f32.mrb[0].mxu0
  %v1434 = vpop.f32.mrb[0].mxu0
  %v1435 = vadd.f32 %v373, %v1434
  %v1436 = vpop.f32.mrb[0].mxu0
  %1437 = vmatprep.mubr.bf16.mxu0 0
  %1438 = vmatmul.mubr.bf16.gmra.mrb[0].mxu0 %v1295
  %v1439 = vpop.f32.mrb[0].mxu0
  %v1440 = vadd.f32 %v378, %v1439
  %v1441 = vpop.f32.mrb[0].mxu0
  %v1442 = vpop.f32.mrb[0].mxu0
  %v1443 = vadd.f32 %v381, %v1442
  %v1444 = vpop.f32.mrb[0].mxu0
  %1445 = vmatprep.mubr.bf16.mxu0 0
  %1446 = vmatmul.mubr.bf16.gmra.mrb[0].mxu0 %v1298
  %v1447 = vpop.f32.mrb[0].mxu0
  %v1448 = vadd.f32 %v386, %v1447
  %v1449 = vpop.f32.mrb[0].mxu0
  %v1450 = vpop.f32.mrb[0].mxu0
  %v1451 = vadd.f32 %v389, %v1450
  %v1452 = vpop.f32.mrb[0].mxu0
  %1453 = vmatprep.mubr.bf16.mxu0 0
  %1454 = vmatmul.mubr.bf16.gmra.mrb[0].mxu0 %v1301
  %v1455 = vpop.f32.mrb[0].mxu0
  %v1456 = vadd.f32 %v394, %v1455
  %v1457 = vpop.f32.mrb[0].mxu0
  %v1458 = vpop.f32.mrb[0].mxu0
  %v1459 = vadd.f32 %v397, %v1458
  %v1460 = vpop.f32.mrb[0].mxu0
  %1461 = vmatprep.mubr.bf16.mxu0 0
  %1462 = vmatmul.mubr.bf16.gmra.mrb[0].mxu0 %v1304
  %v1463 = vpop.f32.mrb[0].mxu0
  %v1464 = vadd.f32 %v402, %v1463
  %v1465 = vpop.f32.mrb[0].mxu0
  %v1466 = vpop.f32.mrb[0].mxu0
  %v1467 = vadd.f32 %v405, %v1466
  %v1468 = vpop.f32.mrb[0].mxu0
  %1469 = vdwg.mxu0
  %v1470 = vtanh.pop %v1344
  %v1471 = vtanh.pop %v1347
  %v1472 = vtanh.pop %v1352
  %v1473 = vtanh.pop %v1355
  %v1474 = vtanh.pop %v1360
  %v1475 = vtanh.pop %v1363
  %v1476 = vtanh.pop %v1368
  %v1477 = vtanh.pop %v1371
  %v1478 = vtanh.pop %v1376
  %v1479 = vtanh.pop %v1379
  %v1480 = vtanh.pop %v1384
  %v1481 = vtanh.pop %v1387
  %v1482 = vtanh.pop %v1392
  %v1483 = vtanh.pop %v1395
  %v1484 = vtanh.pop %v1400
  %v1485 = vtanh.pop %v1403
  %v1486 = vtanh.pop %v1408
  %v1487 = vtanh.pop %v1411
  %v1488 = vtanh.pop %v1416
  %v1489 = vtanh.pop %v1419
  %v1490 = vtanh.pop %v1424
  %v1491 = vtanh.pop %v1427
  %v1492 = vtanh.pop %v1432
  %v1493 = vtanh.pop %v1435
  %v1494 = vtanh.pop %v1440
  %v1495 = vtanh.pop %v1443
  %v1496 = vtanh.pop %v1448
  %v1497 = vtanh.pop %v1451
  %v1498 = vtanh.pop %v1456
  %v1499 = vtanh.pop %v1459
  %v1500 = vtanh.pop %v1464
  %v1501 = vtanh.pop %v1467
  %v1502 = vpack.c.bf16 %v1471, %v1470
  %v1503 = vpack.c.bf16 %v1473, %v1472
  %v1504 = vpack.c.bf16 %v1475, %v1474
  %v1505 = vpack.c.bf16 %v1477, %v1476
  %v1506 = vpack.c.bf16 %v1479, %v1478
  %v1507 = vpack.c.bf16 %v1481, %v1480
  %v1508 = vpack.c.bf16 %v1483, %v1482
  %v1509 = vpack.c.bf16 %v1485, %v1484
  %v1510 = vpack.c.bf16 %v1487, %v1486
  %v1511 = vpack.c.bf16 %v1489, %v1488
  %v1512 = vpack.c.bf16 %v1491, %v1490
  %v1513 = vpack.c.bf16 %v1493, %v1492
  %v1514 = vpack.c.bf16 %v1495, %v1494
  %v1515 = vpack.c.bf16 %v1497, %v1496
  %v1516 = vpack.c.bf16 %v1499, %v1498
  %v1517 = vpack.c.bf16 %v1501, %v1500
  %v1518 = vld [vmem:[%s9] sm:$0xf]
  %v1519 = vld [vmem:[%s9 + $0x4] sm:$0xf]
  %v1520 = vld [vmem:[%s9 + $0x8] sm:$0xf]
  %v1521 = vld [vmem:[%s9 + $0xc] sm:$0xf]
  %v1522 = vld [vmem:[%s10] sm:$0x1]
  %v1524 = vlaneseq
  %v1525 = vshrl.u32 %v1524, 7
  %v1526 = vsub.s32 0, %v1525
  %v1527 = vrot.slane %v1522, %v1526
  %v1533 = vunpack.c.l.b16 %v1518
  %v1534 = vunpack.c.l.b16 %v1519
  %v1535 = vunpack.c.l.b16 %v1520
  %v1536 = vunpack.c.l.b16 %v1521
  %v1537 = vpack.c.b16 %v1534, %v1533
  %v1538 = vpack.c.b16 %v1536, %v1535
  %v1542 = vsel %vm711, %v1502, 0
  %v1545 = vsel %vm711, %v1503, 0
  %v1548 = vsel %vm711, %v1504, 0
  %v1551 = vsel %vm711, %v1505, 0
  %v1554 = vsel %vm711, %v1506, 0
  %v1557 = vsel %vm711, %v1507, 0
  %v1560 = vsel %vm711, %v1508, 0
  %v1563 = vsel %vm711, %v1509, 0
  %v1566 = vsel %vm711, %v1510, 0
  %v1569 = vsel %vm711, %v1511, 0
  %v1572 = vsel %vm711, %v1512, 0
  %v1575 = vsel %vm711, %v1513, 0
  %v1578 = vsel %vm711, %v1514, 0
  %v1581 = vsel %vm711, %v1515, 0
  %v1584 = vsel %vm711, %v1516, 0
  %v1587 = vsel %vm711, %v1517, 0
  %1589 = vmatprep.subr.bf16.mxu0 0
  %1590 = vmatpush1.bf16.msra.mxu0 %v1537
  %1591 = vmatprep.subr.bf16.mxu0 0
  %1592 = vmatpush1.bf16.msra.mxu0 %v1538
  %1593 = vmatprep.subr.bf16.mxu0 0
  %1594 = vmatpush1.bf16.msra.mxu0 0
  %1595 = vmatprep.subr.bf16.mxu0 0
  %1596 = vmatpush1.bf16.msra.mxu0 0
  %1597 = vmatprep.subr.bf16.mxu0 0
  %1598 = vmatpush1.bf16.msra.mxu0 0
  %1599 = vmatprep.subr.bf16.mxu0 0
  %1600 = vmatpush1.bf16.msra.mxu0 0
  %1601 = vmatprep.subr.bf16.mxu0 0
  %1602 = vmatpush1.bf16.msra.mxu0 0
  %1603 = vmatprep.subr.bf16.mxu0 0
  %1604 = vmatpush1.bf16.msra.mxu0 0
  %1605 = vmatprep.subr.bf16.mxu0 0
  %1606 = vmatpush1.bf16.msra.mxu0 0
  %1607 = vmatprep.subr.bf16.mxu0 0
  %1608 = vmatpush1.bf16.msra.mxu0 0
  %1609 = vmatprep.subr.bf16.mxu0 0
  %1610 = vmatpush1.bf16.msra.mxu0 0
  %1611 = vmatprep.subr.bf16.mxu0 0
  %1612 = vmatpush1.bf16.msra.mxu0 0
  %1613 = vmatprep.subr.bf16.mxu0 0
  %1614 = vmatpush1.bf16.msra.mxu0 0
  %1615 = vmatprep.subr.bf16.mxu0 0
  %1616 = vmatpush1.bf16.msra.mxu0 0
  %1617 = vmatprep.subr.bf16.mxu0 0
  %1618 = vmatpush1.bf16.msra.mxu0 0
  %1619 = vmatprep.subr.bf16.mxu0 0
  %1620 = vmatpush1.bf16.msra.mxu0 0
  %1621 = vmatprep.mubr.bf16.mxu0 0
  %1622 = vmatmul.mubr.bf16.gmra.mrb[0].mxu0 %v1542
  %v1623 = vpop.f32.mrb[0].mxu0
  %v1624 = vadd.f32 %v1527, %v1623
  %v1625 = vpop.f32.mrb[0].mxu0
  %v1626 = vpop.f32.mrb[0].mxu0
  %v1627 = vadd.f32 %v1527, %v1626
  %v1628 = vpop.f32.mrb[0].mxu0
  %1629 = vmatprep.mubr.bf16.mxu0 0
  %1630 = vmatmul.mubr.bf16.gmra.mrb[0].mxu0 %v1545
  %v1631 = vpop.f32.mrb[0].mxu0
  %v1632 = vadd.f32 %v1527, %v1631
  %v1633 = vpop.f32.mrb[0].mxu0
  %v1634 = vpop.f32.mrb[0].mxu0
  %v1635 = vadd.f32 %v1527, %v1634
  %v1636 = vpop.f32.mrb[0].mxu0
  %1637 = vmatprep.mubr.bf16.mxu0 0
  %1638 = vmatmul.mubr.bf16.gmra.mrb[0].mxu0 %v1548
  %v1639 = vpop.f32.mrb[0].mxu0
  %v1640 = vadd.f32 %v1527, %v1639
  %v1641 = vpop.f32.mrb[0].mxu0
  %v1642 = vpop.f32.mrb[0].mxu0
  %v1643 = vadd.f32 %v1527, %v1642
  %v1644 = vpop.f32.mrb[0].mxu0
  %1645 = vmatprep.mubr.bf16.mxu0 0
  %1646 = vmatmul.mubr.bf16.gmra.mrb[0].mxu0 %v1551
  %v1647 = vpop.f32.mrb[0].mxu0
  %v1648 = vadd.f32 %v1527, %v1647
  %v1649 = vpop.f32.mrb[0].mxu0
  %v1650 = vpop.f32.mrb[0].mxu0
  %v1651 = vadd.f32 %v1527, %v1650
  %v1652 = vpop.f32.mrb[0].mxu0
  %1653 = vmatprep.mubr.bf16.mxu0 0
  %1654 = vmatmul.mubr.bf16.gmra.mrb[0].mxu0 %v1554
  %v1655 = vpop.f32.mrb[0].mxu0
  %v1656 = vadd.f32 %v1527, %v1655
  %v1657 = vpop.f32.mrb[0].mxu0
  %v1658 = vpop.f32.mrb[0].mxu0
  %v1659 = vadd.f32 %v1527, %v1658
  %v1660 = vpop.f32.mrb[0].mxu0
  %1661 = vmatprep.mubr.bf16.mxu0 0
  %1662 = vmatmul.mubr.bf16.gmra.mrb[0].mxu0 %v1557
  %v1663 = vpop.f32.mrb[0].mxu0
  %v1664 = vadd.f32 %v1527, %v1663
  %v1665 = vpop.f32.mrb[0].mxu0
  %v1666 = vpop.f32.mrb[0].mxu0
  %v1667 = vadd.f32 %v1527, %v1666
  %v1668 = vpop.f32.mrb[0].mxu0
  %1669 = vmatprep.mubr.bf16.mxu0 0
  %1670 = vmatmul.mubr.bf16.gmra.mrb[0].mxu0 %v1560
  %v1671 = vpop.f32.mrb[0].mxu0
  %v1672 = vadd.f32 %v1527, %v1671
  %v1673 = vpop.f32.mrb[0].mxu0
  %v1674 = vpop.f32.mrb[0].mxu0
  %v1675 = vadd.f32 %v1527, %v1674
  %v1676 = vpop.f32.mrb[0].mxu0
  %1677 = vmatprep.mubr.bf16.mxu0 0
  %1678 = vmatmul.mubr.bf16.gmra.mrb[0].mxu0 %v1563
  %v1679 = vpop.f32.mrb[0].mxu0
  %v1680 = vadd.f32 %v1527, %v1679
  %v1681 = vpop.f32.mrb[0].mxu0
  %v1682 = vpop.f32.mrb[0].mxu0
  %v1683 = vadd.f32 %v1527, %v1682
  %v1684 = vpop.f32.mrb[0].mxu0
  %1685 = vmatprep.mubr.bf16.mxu0 0
  %1686 = vmatmul.mubr.bf16.gmra.mrb[0].mxu0 %v1566
  %v1687 = vpop.f32.mrb[0].mxu0
  %v1688 = vadd.f32 %v1527, %v1687
  %v1689 = vpop.f32.mrb[0].mxu0
  %v1690 = vpop.f32.mrb[0].mxu0
  %v1691 = vadd.f32 %v1527, %v1690
  %v1692 = vpop.f32.mrb[0].mxu0
  %1693 = vmatprep.mubr.bf16.mxu0 0
  %1694 = vmatmul.mubr.bf16.gmra.mrb[0].mxu0 %v1569
  %v1695 = vpop.f32.mrb[0].mxu0
  %v1696 = vadd.f32 %v1527, %v1695
  %v1697 = vpop.f32.mrb[0].mxu0
  %v1698 = vpop.f32.mrb[0].mxu0
  %v1699 = vadd.f32 %v1527, %v1698
  %v1700 = vpop.f32.mrb[0].mxu0
  %1701 = vmatprep.mubr.bf16.mxu0 0
  %1702 = vmatmul.mubr.bf16.gmra.mrb[0].mxu0 %v1572
  %v1703 = vpop.f32.mrb[0].mxu0
  %v1704 = vadd.f32 %v1527, %v1703
  %v1705 = vpop.f32.mrb[0].mxu0
  %v1706 = vpop.f32.mrb[0].mxu0
  %v1707 = vadd.f32 %v1527, %v1706
  %v1708 = vpop.f32.mrb[0].mxu0
  %1709 = vmatprep.mubr.bf16.mxu0 0
  %1710 = vmatmul.mubr.bf16.gmra.mrb[0].mxu0 %v1575
  %v1711 = vpop.f32.mrb[0].mxu0
  %v1712 = vadd.f32 %v1527, %v1711
  %v1713 = vpop.f32.mrb[0].mxu0
  %v1714 = vpop.f32.mrb[0].mxu0
  %v1715 = vadd.f32 %v1527, %v1714
  %v1716 = vpop.f32.mrb[0].mxu0
  %1717 = vmatprep.mubr.bf16.mxu0 0
  %1718 = vmatmul.mubr.bf16.gmra.mrb[0].mxu0 %v1578
  %v1719 = vpop.f32.mrb[0].mxu0
  %v1720 = vadd.f32 %v1527, %v1719
  %v1721 = vpop.f32.mrb[0].mxu0
  %v1722 = vpop.f32.mrb[0].mxu0
  %v1723 = vadd.f32 %v1527, %v1722
  %v1724 = vpop.f32.mrb[0].mxu0
  %1725 = vmatprep.mubr.bf16.mxu0 0
  %1726 = vmatmul.mubr.bf16.gmra.mrb[0].mxu0 %v1581
  %v1727 = vpop.f32.mrb[0].mxu0
  %v1728 = vadd.f32 %v1527, %v1727
  %v1729 = vpop.f32.mrb[0].mxu0
  %v1730 = vpop.f32.mrb[0].mxu0
  %v1731 = vadd.f32 %v1527, %v1730
  %v1732 = vpop.f32.mrb[0].mxu0
  %1733 = vmatprep.mubr.bf16.mxu0 0
  %1734 = vmatmul.mubr.bf16.gmra.mrb[0].mxu0 %v1584
  %v1735 = vpop.f32.mrb[0].mxu0
  %v1736 = vadd.f32 %v1527, %v1735
  %v1737 = vpop.f32.mrb[0].mxu0
  %v1738 = vpop.f32.mrb[0].mxu0
  %v1739 = vadd.f32 %v1527, %v1738
  %v1740 = vpop.f32.mrb[0].mxu0
  %1741 = vmatprep.mubr.bf16.mxu0 0
  %1742 = vmatmul.mubr.bf16.gmra.mrb[0].mxu0 %v1587
  %v1743 = vpop.f32.mrb[0].mxu0
  %v1744 = vadd.f32 %v1527, %v1743
  %v1745 = vpop.f32.mrb[0].mxu0
  %v1746 = vpop.f32.mrb[0].mxu0
  %v1747 = vadd.f32 %v1527, %v1746
  %v1748 = vpop.f32.mrb[0].mxu0
  %1749 = vdwg.mxu0
  %vm1750 = vcmask 130048
  %1751 = vst.msk [vmem:[%s11] sm:$0xff] %vm1750, %v1624
  %1752 = vst.msk [vmem:[%s11 + $0x8] sm:$0xff] %vm1750, %v1627
  %1753 = vst.msk [vmem:[%s11 + $0x10] sm:$0xff] %vm1750, %v1632
  %1754 = vst.msk [vmem:[%s11 + $0x18] sm:$0xff] %vm1750, %v1635
  %1755 = vst.msk [vmem:[%s11 + $0x20] sm:$0xff] %vm1750, %v1640
  %1756 = vst.msk [vmem:[%s11 + $0x28] sm:$0xff] %vm1750, %v1643
  %1757 = vst.msk [vmem:[%s11 + $0x30] sm:$0xff] %vm1750, %v1648
  %1758 = vst.msk [vmem:[%s11 + $0x38] sm:$0xff] %vm1750, %v1651
  %1759 = vst.msk [vmem:[%s11 + $0x40] sm:$0xff] %vm1750, %v1656
  %1760 = vst.msk [vmem:[%s11 + $0x48] sm:$0xff] %vm1750, %v1659
  %1761 = vst.msk [vmem:[%s11 + $0x50] sm:$0xff] %vm1750, %v1664
  %1762 = vst.msk [vmem:[%s11 + $0x58] sm:$0xff] %vm1750, %v1667
  %1763 = vst.msk [vmem:[%s11 + $0x60] sm:$0xff] %vm1750, %v1672
  %1764 = vst.msk [vmem:[%s11 + $0x68] sm:$0xff] %vm1750, %v1675
  %1765 = vst.msk [vmem:[%s11 + $0x70] sm:$0xff] %vm1750, %v1680
  %1766 = vst.msk [vmem:[%s11 + $0x78] sm:$0xff] %vm1750, %v1683
  %1767 = vst.msk [vmem:[%s11 + $0x80] sm:$0xff] %vm1750, %v1688
  %1768 = vst.msk [vmem:[%s11 + $0x88] sm:$0xff] %vm1750, %v1691
  %1769 = vst.msk [vmem:[%s11 + $0x90] sm:$0xff] %vm1750, %v1696
  %1770 = vst.msk [vmem:[%s11 + $0x98] sm:$0xff] %vm1750, %v1699
  %1771 = vst.msk [vmem:[%s11 + $0xa0] sm:$0xff] %vm1750, %v1704
  %1772 = vst.msk [vmem:[%s11 + $0xa8] sm:$0xff] %vm1750, %v1707
  %1773 = vst.msk [vmem:[%s11 + $0xb0] sm:$0xff] %vm1750, %v1712
  %1774 = vst.msk [vmem:[%s11 + $0xb8] sm:$0xff] %vm1750, %v1715
  %1775 = vst.msk [vmem:[%s11 + $0xc0] sm:$0xff] %vm1750, %v1720
  %1776 = vst.msk [vmem:[%s11 + $0xc8] sm:$0xff] %vm1750, %v1723
  %1777 = vst.msk [vmem:[%s11 + $0xd0] sm:$0xff] %vm1750, %v1728
  %1778 = vst.msk [vmem:[%s11 + $0xd8] sm:$0xff] %vm1750, %v1731
  %1779 = vst.msk [vmem:[%s11 + $0xe0] sm:$0xff] %vm1750, %v1736
  %1780 = vst.msk [vmem:[%s11 + $0xe8] sm:$0xff] %vm1750, %v1739
  %1781 = vst.msk [vmem:[%s11 + $0xf0] sm:$0xff] %vm1750, %v1744
  %1782 = vst.msk [vmem:[%s11 + $0xf8] sm:$0xff] %vm1750, %v1747
  %1783 = vst.msk [vmem:[%s12] sm:$0xff] %vm194, %v795
  %1784 = vst.msk [vmem:[%s12 + $0x8] sm:$0xff] %vm194, %v798
  %1785 = vst.msk [vmem:[%s12 + $0x10] sm:$0xff] %vm194, %v803
  %1786 = vst.msk [vmem:[%s12 + $0x18] sm:$0xff] %vm194, %v806
  %1787 = vst.msk [vmem:[%s12 + $0x20] sm:$0xff] %vm194, %v811
  %1788 = vst.msk [vmem:[%s12 + $0x28] sm:$0xff] %vm194, %v814
  %1789 = vst.msk [vmem:[%s12 + $0x30] sm:$0xff] %vm194, %v819
  %1790 = vst.msk [vmem:[%s12 + $0x38] sm:$0xff] %vm194, %v822
  %1791 = vst.msk [vmem:[%s12 + $0x40] sm:$0xff] %vm194, %v827
  %1792 = vst.msk [vmem:[%s12 + $0x48] sm:$0xff] %vm194, %v830
  %1793 = vst.msk [vmem:[%s12 + $0x50] sm:$0xff] %vm194, %v835
  %1794 = vst.msk [vmem:[%s12 + $0x58] sm:$0xff] %vm194, %v838
  %1795 = vst.msk [vmem:[%s12 + $0x60] sm:$0xff] %vm194, %v843
  %1796 = vst.msk [vmem:[%s12 + $0x68] sm:$0xff] %vm194, %v846
  %1797 = vst.msk [vmem:[%s12 + $0x70] sm:$0xff] %vm194, %v851
  %1798 = vst.msk [vmem:[%s12 + $0x78] sm:$0xff] %vm194, %v854
  %1799 = vst.msk [vmem:[%s12 + $0x80] sm:$0xff] %vm194, %v859
  %1800 = vst.msk [vmem:[%s12 + $0x88] sm:$0xff] %vm194, %v862
  %1801 = vst.msk [vmem:[%s12 + $0x90] sm:$0xff] %vm194, %v867
  %1802 = vst.msk [vmem:[%s12 + $0x98] sm:$0xff] %vm194, %v870
  %1803 = vst.msk [vmem:[%s12 + $0xa0] sm:$0xff] %vm194, %v875
  %1804 = vst.msk [vmem:[%s12 + $0xa8] sm:$0xff] %vm194, %v878
  %1805 = vst.msk [vmem:[%s12 + $0xb0] sm:$0xff] %vm194, %v883
  %1806 = vst.msk [vmem:[%s12 + $0xb8] sm:$0xff] %vm194, %v886
  %1807 = vst.msk [vmem:[%s12 + $0xc0] sm:$0xff] %vm194, %v891
  %1808 = vst.msk [vmem:[%s12 + $0xc8] sm:$0xff] %vm194, %v894
  %1809 = vst.msk [vmem:[%s12 + $0xd0] sm:$0xff] %vm194, %v899
  %1810 = vst.msk [vmem:[%s12 + $0xd8] sm:$0xff] %vm194, %v902
  %1811 = vst.msk [vmem:[%s12 + $0xe0] sm:$0xff] %vm194, %v907
  %1812 = vst.msk [vmem:[%s12 + $0xe8] sm:$0xff] %vm194, %v910
  %1813 = vst.msk [vmem:[%s12 + $0xf0] sm:$0xff] %vm194, %v915
  %1814 = vst.msk [vmem:[%s12 + $0xf8] sm:$0xff] %vm194, %v918
  %1847 = vrot.lane.b32.xlu0 %v795, 120
  %v1848 = vpop.permute.xlu0 %1847
  %1849 = vrot.lane.b32.xlu0 %v798, 120
  %v1850 = vpop.permute.xlu0 %1849
  %1851 = vrot.lane.b32.xlu0 %v803, 120
  %v1852 = vpop.permute.xlu0 %1851
  %1853 = vrot.lane.b32.xlu0 %v806, 120
  %v1854 = vpop.permute.xlu0 %1853
  %1855 = vrot.lane.b32.xlu0 %v811, 120
  %v1856 = vpop.permute.xlu0 %1855
  %1857 = vrot.lane.b32.xlu0 %v814, 120
  %v1858 = vpop.permute.xlu0 %1857
  %1859 = vrot.lane.b32.xlu0 %v819, 120
  %v1860 = vpop.permute.xlu0 %1859
  %1861 = vrot.lane.b32.xlu0 %v822, 120
  %v1862 = vpop.permute.xlu0 %1861
  %1863 = vrot.lane.b32.xlu0 %v827, 120
  %v1864 = vpop.permute.xlu0 %1863
  %1865 = vrot.lane.b32.xlu0 %v830, 120
  %v1866 = vpop.permute.xlu0 %1865
  %1867 = vrot.lane.b32.xlu0 %v835, 120
  %v1868 = vpop.permute.xlu0 %1867
  %1869 = vrot.lane.b32.xlu0 %v838, 120
  %v1870 = vpop.permute.xlu0 %1869
  %1871 = vrot.lane.b32.xlu0 %v843, 120
  %v1872 = vpop.permute.xlu0 %1871
  %1873 = vrot.lane.b32.xlu0 %v846, 120
  %v1874 = vpop.permute.xlu0 %1873
  %1875 = vrot.lane.b32.xlu0 %v851, 120
  %v1876 = vpop.permute.xlu0 %1875
  %1877 = vrot.lane.b32.xlu0 %v854, 120
  %v1878 = vpop.permute.xlu0 %1877
  %1879 = vrot.lane.b32.xlu0 %v859, 120
  %v1880 = vpop.permute.xlu0 %1879
  %1881 = vrot.lane.b32.xlu0 %v862, 120
  %v1882 = vpop.permute.xlu0 %1881
  %1883 = vrot.lane.b32.xlu0 %v867, 120
  %v1884 = vpop.permute.xlu0 %1883
  %1885 = vrot.lane.b32.xlu0 %v870, 120
  %v1886 = vpop.permute.xlu0 %1885
  %1887 = vrot.lane.b32.xlu0 %v875, 120
  %v1888 = vpop.permute.xlu0 %1887
  %1889 = vrot.lane.b32.xlu0 %v878, 120
  %v1890 = vpop.permute.xlu0 %1889
  %1891 = vrot.lane.b32.xlu0 %v883, 120
  %v1892 = vpop.permute.xlu0 %1891
  %1893 = vrot.lane.b32.xlu0 %v886, 120
  %v1894 = vpop.permute.xlu0 %1893
  %1895 = vrot.lane.b32.xlu0 %v891, 120
  %v1896 = vpop.permute.xlu0 %1895
  %1897 = vrot.lane.b32.xlu0 %v894, 120
  %v1898 = vpop.permute.xlu0 %1897
  %1899 = vrot.lane.b32.xlu0 %v899, 120
  %v1900 = vpop.permute.xlu0 %1899
  %1901 = vrot.lane.b32.xlu0 %v902, 120
  %v1902 = vpop.permute.xlu0 %1901
  %1903 = vrot.lane.b32.xlu0 %v907, 120
  %v1904 = vpop.permute.xlu0 %1903
  %1905 = vrot.lane.b32.xlu0 %v910, 120
  %v1906 = vpop.permute.xlu0 %1905
  %1907 = vrot.lane.b32.xlu0 %v915, 120
  %v1908 = vpop.permute.xlu0 %1907
  %1909 = vrot.lane.b32.xlu0 %v918, 120
  %v1910 = vpop.permute.xlu0 %1909
  %1943 = vst.msk [vmem:[%s13] sm:$0xff] %vm194, %v1848
  %1944 = vst.msk [vmem:[%s13 + $0x8] sm:$0xff] %vm194, %v1850
  %1945 = vst.msk [vmem:[%s13 + $0x10] sm:$0xff] %vm194, %v1852
  %1946 = vst.msk [vmem:[%s13 + $0x18] sm:$0xff] %vm194, %v1854
  %1947 = vst.msk [vmem:[%s13 + $0x20] sm:$0xff] %vm194, %v1856
  %1948 = vst.msk [vmem:[%s13 + $0x28] sm:$0xff] %vm194, %v1858
  %1949 = vst.msk [vmem:[%s13 + $0x30] sm:$0xff] %vm194, %v1860
  %1950 = vst.msk [vmem:[%s13 + $0x38] sm:$0xff] %vm194, %v1862
  %1951 = vst.msk [vmem:[%s13 + $0x40] sm:$0xff] %vm194, %v1864
  %1952 = vst.msk [vmem:[%s13 + $0x48] sm:$0xff] %vm194, %v1866
  %1953 = vst.msk [vmem:[%s13 + $0x50] sm:$0xff] %vm194, %v1868
  %1954 = vst.msk [vmem:[%s13 + $0x58] sm:$0xff] %vm194, %v1870
  %1955 = vst.msk [vmem:[%s13 + $0x60] sm:$0xff] %vm194, %v1872
  %1956 = vst.msk [vmem:[%s13 + $0x68] sm:$0xff] %vm194, %v1874
  %1957 = vst.msk [vmem:[%s13 + $0x70] sm:$0xff] %vm194, %v1876
  %1958 = vst.msk [vmem:[%s13 + $0x78] sm:$0xff] %vm194, %v1878
  %1959 = vst.msk [vmem:[%s13 + $0x80] sm:$0xff] %vm194, %v1880
  %1960 = vst.msk [vmem:[%s13 + $0x88] sm:$0xff] %vm194, %v1882
  %1961 = vst.msk [vmem:[%s13 + $0x90] sm:$0xff] %vm194, %v1884
  %1962 = vst.msk [vmem:[%s13 + $0x98] sm:$0xff] %vm194, %v1886
  %1963 = vst.msk [vmem:[%s13 + $0xa0] sm:$0xff] %vm194, %v1888
  %1964 = vst.msk [vmem:[%s13 + $0xa8] sm:$0xff] %vm194, %v1890
  %1965 = vst.msk [vmem:[%s13 + $0xb0] sm:$0xff] %vm194, %v1892
  %1966 = vst.msk [vmem:[%s13 + $0xb8] sm:$0xff] %vm194, %v1894
  %1967 = vst.msk [vmem:[%s13 + $0xc0] sm:$0xff] %vm194, %v1896
  %1968 = vst.msk [vmem:[%s13 + $0xc8] sm:$0xff] %vm194, %v1898
  %1969 = vst.msk [vmem:[%s13 + $0xd0] sm:$0xff] %vm194, %v1900
  %1970 = vst.msk [vmem:[%s13 + $0xd8] sm:$0xff] %vm194, %v1902
  %1971 = vst.msk [vmem:[%s13 + $0xe0] sm:$0xff] %vm194, %v1904
  %1972 = vst.msk [vmem:[%s13 + $0xe8] sm:$0xff] %vm194, %v1906
  %1973 = vst.msk [vmem:[%s13 + $0xf0] sm:$0xff] %vm194, %v1908
  %1974 = vst.msk [vmem:[%s13 + $0xf8] sm:$0xff] %vm194, %v1910
  // Predicated region
  $region46: #{cvae_forward.1} parent=0 // pred_check
    _
  $region47: #{cvae_forward.1} parent=0 // pred_check_branch
    %1976 = sbr.rel (0) target = $region49
  $region48: #{cvae_forward.1} parent=0 // pred_region
    _
  $region49: #{cvae_forward.1} parent=0 // pred_fallthru
    _
  // Predicated region
  $region50: #{cvae_forward.1} parent=0 // pred_check
    _
  $region51: #{cvae_forward.1} parent=0 // pred_check_branch
    %1978 = sbr.rel (0) target = $region53
  $region52: #{cvae_forward.1} parent=0 // pred_region
    _
  $region53: #{cvae_forward.1} parent=0 // pred_fallthru
    _
  // Predicated region
  $region54: #{cvae_forward.1} parent=0 // pred_check
    _
  $region55: #{cvae_forward.1} parent=0 // pred_check_branch
    %1980 = sbr.rel (0) target = $region57
  $region56: #{cvae_forward.1} parent=0 // pred_region
    _
  $region57: #{cvae_forward.1} parent=0 // pred_fallthru
    _
  // Predicated region
  $region58: #{cvae_forward.1} parent=0 // pred_check
    _
  $region59: #{cvae_forward.1} parent=0 // pred_check_branch
    %1982 = sbr.rel (0) target = $region61
  $region60: #{cvae_forward.1} parent=0 // pred_region
    _
  $region61: #{cvae_forward.1} parent=0 // pred_fallthru
    _
  // Predicated region
  $region62: #{cvae_forward.1} parent=0 // pred_check
    _
  $region63: #{cvae_forward.1} parent=0 // pred_check_branch
    %1984 = sbr.rel (0) target = $region65
  $region64: #{cvae_forward.1} parent=0 // pred_region
    _
  $region65: #{cvae_forward.1} parent=0 // pred_fallthru
    _
  // Predicated region
  $region66: #{cvae_forward.1} parent=0 // pred_check
    _
  $region67: #{cvae_forward.1} parent=0 // pred_check_branch
    %1986 = sbr.rel (0) target = $region69
  $region68: #{cvae_forward.1} parent=0 // pred_region
    _
  $region69: #{cvae_forward.1} parent=0 // pred_fallthru
    _

</llo_original>
